<compile_context>
chip_gen: v6e
topology: v6e:2x2x1
jax: 0.10.0
libtpu: 0.0.40
codegen_flags: <defaults>
</compile_context>

<pallas_src>
import functools

import jax
import jax.numpy as jnp
import numpy as np
from jax.experimental import pallas as pl
from jax.experimental.pallas import tpu as pltpu

_LANE = 128        # output channels padded to a multiple of this (lane-dense)
_SUBLANE = 8
_DEFAULT_TM = 1024             # row tile for the 1x1-conv matmul
_CONV_ACC_BYTES = 256 * 1024   # target live f32 accumulator per conv row tile
_POOL_ROW_BYTES = 512 * 1024   # target live f32 row-sum per pool row tile
_VMEM_LIMIT_BYTES = 32 * 1024 * 1024


def _round_up(x, m):
    return (x + m - 1) // m * m


def _pick_row_tile(H, Wp, bytes_per_flat_row, target_bytes):
    """Image rows per grid row-tile: keep the per-tile live f32 working set
    near `target_bytes`, and give every image at least two row tiles (software
    pipelining + v7x's 2 TensorCores) whenever H allows."""
    th = max(1, target_bytes // max(1, bytes_per_flat_row * Wp))
    th = min(th, H, max(1, -(-H // 2)))
    return th


# ----------------------------------------------------------------------------
# Pallas kernels
# ----------------------------------------------------------------------------
def _matmul_bias_relu_kernel(x_ref, w_ref, b_ref, o_ref):
    """One (TM, K) x (K, Coutp) tile: relu(x @ w + b); bf16 MXU, f32 epilogue."""
    acc = jnp.dot(x_ref[...], w_ref[...], preferred_element_type=jnp.float32)
    o_ref[...] = jnp.maximum(acc + b_ref[...], 0.0).astype(o_ref.dtype)


def _conv_taps_kernel(xf_ref, w_ref, b_ref, o_ref, *, kh, kw, wp, tr):
    """kh x kw conv for one row tile of one image; taps accumulated in-kernel.

    xf_ref: (1, rows_in, Cin)    spatially padded image, (H, W) flattened,
                                 resident across this image's row tiles
    w_ref : (kh*kw, Cin, Coutp)  one (Cin, Coutp) weight block per tap
    b_ref : (1, Coutp) f32
    o_ref : (1, tr, Coutp)       tr = rows-per-tile (multiple of wp and 8)
    """
    t = pl.program_id(1)
    base = pl.multiple_of(t * tr, _SUBLANE)        # tr and wp are multiples of 8
    kw_pad = _SUBLANE if kw > 1 else 0
    coutp = o_ref.shape[-1]
    acc = jnp.zeros((tr, coutp), jnp.float32)
    for dh in range(kh):
        start = pl.multiple_of(base + dh * wp, _SUBLANE)
        x_win = xf_ref[0, pl.ds(start, tr + kw_pad), :]    # 8-aligned window
        for dw in range(kw):
            x_tap = x_win if kw == 1 else x_win[dw:dw + tr, :]
            acc = acc + jnp.dot(x_tap, w_ref[dh * kw + dw, :, :],
                                preferred_element_type=jnp.float32)
    # TODO(synk): replace the dw-shifted value slices with pltpu.roll (XLU)
    # once packed-bf16 sublane rotation is validated on all target chips.
    o_ref[0, :, :] = jnp.maximum(acc + b_ref[...], 0.0).astype(o_ref.dtype)


def _pool_conv1x1_kernel(xf_ref, w_ref, b_ref, o_ref, *, wp, tr):
    """Fused 3x3/stride-1 avg pool (count_include_pad=True) + 1x1 conv + ReLU.

    Pool is done with separable row+column adds on the flattened padded image
    (same layout as _conv_taps_kernel), then a single MXU matmul.
    """
    t = pl.program_id(1)
    base = pl.multiple_of(t * tr, _SUBLANE)
    win = tr + _SUBLANE
    rows = xf_ref[0, pl.ds(base, win), :].astype(jnp.float32)
    rows = rows + xf_ref[0, pl.ds(pl.multiple_of(base + wp, _SUBLANE),
                                  win), :].astype(jnp.float32)
    rows = rows + xf_ref[0, pl.ds(pl.multiple_of(base + 2 * wp, _SUBLANE),
                                  win), :].astype(jnp.float32)
    pooled = rows[0:tr, :] + rows[1:tr + 1, :] + rows[2:tr + 2, :]
    pooled = (pooled * (1.0 / 9.0)).astype(jnp.bfloat16)
    acc = jnp.dot(pooled, w_ref[...], preferred_element_type=jnp.float32)
    o_ref[0, :, :] = jnp.maximum(acc + b_ref[...], 0.0).astype(o_ref.dtype)


# ----------------------------------------------------------------------------
# pallas_call wrappers
# ----------------------------------------------------------------------------
def _matmul_bias_relu(x2d, w2d, b2d, *, tm=_DEFAULT_TM):
    """relu(x2d @ w2d + b2d) with an M-tiled grid; returns (M, Coutp) bf16."""
    M, K = x2d.shape
    _, coutp = w2d.shape
    tm = min(tm, _round_up(M, _SUBLANE))
    nt = -(-M // tm)
    tm = _round_up(-(-M // nt), _SUBLANE)      # rebalance: minimal pad rows
    mp = nt * tm
    if mp != M:
        x2d = jnp.pad(x2d, ((0, mp - M), (0, 0)))
    out = pl.pallas_call(
        _matmul_bias_relu_kernel,
        out_shape=jax.ShapeDtypeStruct((mp, coutp), jnp.bfloat16),
        grid=(nt,),
        in_specs=[
            pl.BlockSpec((tm, K), lambda i: (i, 0)),
            pl.BlockSpec((K, coutp), lambda i: (0, 0)),    # weights resident
            pl.BlockSpec((1, coutp), lambda i: (0, 0)),
        ],
        out_specs=pl.BlockSpec((tm, coutp), lambda i: (i, 0)),
        compiler_params=pltpu.CompilerParams(
            dimension_semantics=("parallel",),
            vmem_limit_bytes=_VMEM_LIMIT_BYTES),
    )(x2d, w2d, b2d)
    return out[:M] if mp != M else out


def _pad_flatten(x_bf16, ph, pw, Wp, Ht, extra):
    """Pad NHWC spatially (and up to Ht rows / Wp cols) and flatten (H, W)."""
    N, H, W, cin = x_bf16.shape
    xp = jnp.pad(x_bf16, ((0, 0), (ph, Ht - H + ph + extra),
                          (pw, Wp - W - pw), (0, 0)))
    rows_in = (Ht + 2 * ph + extra) * Wp
    return xp.reshape(N, rows_in, cin), rows_in


def _conv_kxk(x_nhwc, prep):
    N, H, W, cin = x_nhwc.shape
    kh, kw, coutp = prep["kh"], prep["kw"], prep["coutp"]
    ph, pw = (kh - 1) // 2, (kw - 1) // 2
    Wp = _round_up(W + 2 * pw, _SUBLANE)       # 8-aligned tap row offsets
    th = _pick_row_tile(H, Wp, 4 * coutp, _CONV_ACC_BYTES)
    Ht = _round_up(H, th)
    nt = Ht // th
    tr = th * Wp
    extra = 1 if kw > 1 else 0                 # spare zero row keeps the wide
    #                                            (tr + 8)-row window in bounds
    xf, rows_in = _pad_flatten(x_nhwc.astype(jnp.bfloat16), ph, pw, Wp, Ht,
                               extra)
    # TODO(synk): fold this XLA pad into the producing conv's output BlockSpec
    # (or DMA the unpadded activation into a zeroed VMEM scratch) to drop one
    # HBM round trip per spatial conv.
    kernel = functools.partial(_conv_taps_kernel, kh=kh, kw=kw, wp=Wp, tr=tr)
    yf = pl.pallas_call(
        kernel,
        out_shape=jax.ShapeDtypeStruct((N, nt * tr, coutp), jnp.bfloat16),
        grid=(N, nt),
        in_specs=[
            pl.BlockSpec((1, rows_in, cin), lambda n, t: (n, 0, 0)),  # per image
            pl.BlockSpec((kh * kw, cin, coutp), lambda n, t: (0, 0, 0)),
            pl.BlockSpec((1, coutp), lambda n, t: (0, 0)),
        ],
        out_specs=pl.BlockSpec((1, tr, coutp), lambda n, t: (n, t, 0)),
        compiler_params=pltpu.CompilerParams(
            dimension_semantics=("parallel", "parallel"),
            vmem_limit_bytes=_VMEM_LIMIT_BYTES),
    )(xf, prep["w"], prep["b"])
    y = yf.reshape(N, Ht, Wp, coutp)
    return y[:, :H, :W, :]


def pool_basic_conv2d(x_nhwc, prep):
    """avg_pool2d(3x3, stride 1, pad 1) fused with a 1x1 BasicConv2d."""
    assert prep["kind"] == "1x1" and x_nhwc.shape[-1] == prep["cin"]
    N, H, W, cin = x_nhwc.shape
    coutp = prep["coutp"]
    Wp = _round_up(W + 2, _SUBLANE)
    th = _pick_row_tile(H, Wp, 4 * max(cin, coutp), _POOL_ROW_BYTES)
    Ht = _round_up(H, th)
    nt = Ht // th
    tr = th * Wp
    xf, rows_in = _pad_flatten(x_nhwc.astype(jnp.bfloat16), 1, 1, Wp, Ht, 1)
    kernel = functools.partial(_pool_conv1x1_kernel, wp=Wp, tr=tr)
    yf = pl.pallas_call(
        kernel,
        out_shape=jax.ShapeDtypeStruct((N, nt * tr, coutp), jnp.bfloat16),
        grid=(N, nt),
        in_specs=[
            pl.BlockSpec((1, rows_in, cin), lambda n, t: (n, 0, 0)),
            pl.BlockSpec((cin, coutp), lambda n, t: (0, 0)),
            pl.BlockSpec((1, coutp), lambda n, t: (0, 0)),
        ],
        out_specs=pl.BlockSpec((1, tr, coutp), lambda n, t: (n, t, 0)),
        compiler_params=pltpu.CompilerParams(
            dimension_semantics=("parallel", "parallel"),
            vmem_limit_bytes=_VMEM_LIMIT_BYTES),
    )(xf, prep["w"], prep["b"])
    y = yf.reshape(N, Ht, Wp, coutp)
    return y[:, :H, :W, :]


# ----------------------------------------------------------------------------
# BasicConv2d: BN folding, one-time weight prep, forward
# ----------------------------------------------------------------------------
def fold_bn(w, gamma, beta, mean, var, eps=1e-3):
    """Fold eval-mode BatchNorm2d into conv weight (Cout,Cin,kh,kw) + bias."""
    scale = gamma / jnp.sqrt(var + eps)
    return w * scale[:, None, None, None], beta - mean * scale


def prep_basic_conv2d(w, bias, cin_act):
    """One-time parameter preprocessing for a BasicConv2d.

    w, bias are the BN-folded PyTorch-layout (Cout, Cin, kh, kw) weight and
    per-channel bias; cin_act is the channel count of the activation this
    layer will receive (its real channels plus any lane padding carried from
    the previous layer).  Returns ready bf16 kernel operands so no weight
    reshaping/padding/casting happens on the per-call path.
    """
    cout, cin_w, kh, kw = w.shape
    # TODO(synk): only stride-1, odd, 'same'-padding BasicConv2d configs (as
    # used by inception_v3's InceptionC) are implemented.
    assert cin_act >= cin_w and kh % 2 == 1 and kw % 2 == 1 and kw <= 9
    coutp = _round_up(cout, _LANE)
    # TODO(synk): for Cout=160-style configs, benchmark a masked 160-wide store
    # against padding to the next multiple of 128.
    w_full = jnp.zeros((coutp, cin_act, kh, kw), jnp.float32)
    w_full = w_full.at[:cout, :cin_w, :, :].set(w.astype(jnp.float32))
    b2d = jnp.zeros((1, coutp), jnp.float32).at[0, :cout].set(
        bias.astype(jnp.float32))
    if kh == 1 and kw == 1:
        w2d = jnp.transpose(w_full[:, :, 0, 0], (1, 0)).astype(jnp.bfloat16)
        return dict(kind="1x1", w=w2d, b=b2d, cin=cin_act, cout=cout,
                    coutp=coutp)
    wt = jnp.transpose(w_full, (2, 3, 1, 0)).reshape(kh * kw, cin_act, coutp)
    return dict(kind="kxk", kh=kh, kw=kw, w=wt.astype(jnp.bfloat16), b=b2d,
                cin=cin_act, cout=cout, coutp=coutp)


def basic_conv2d(x_nhwc, prep):
    """BasicConv2d forward: conv(bias=False) -> BatchNorm2d(eval) -> ReLU.

    `x_nhwc` is a bf16 NHWC activation whose channel count must equal
    prep['cin'] (real channels plus carried zero lane padding).  Returns a
    bf16 NHWC activation with prep['coutp'] channels; channels beyond
    prep['cout'] are exactly zero and are only cropped at the network output.
    """
    assert x_nhwc.shape[-1] == prep["cin"]
    if prep["kind"] == "1x1":
        N, H, W, cin = x_nhwc.shape
        x2d = x_nhwc.astype(jnp.bfloat16).reshape(N * H * W, cin)
        y2d = _matmul_bias_relu(x2d, prep["w"], prep["b"])
        return y2d.reshape(N, H, W, prep["coutp"])
    return _conv_kxk(x_nhwc, prep)


# ----------------------------------------------------------------------------
# InceptionC built from BasicConv2d
# ----------------------------------------------------------------------------
def init_basic_conv(key, cin, cout, kh, kw):
    k1, k2, k3, k4, k5 = jax.random.split(key, 5)
    w = 0.05 * jax.random.normal(k1, (cout, cin, kh, kw), jnp.float32)
    gamma = 1.0 + 0.1 * jax.random.normal(k2, (cout,), jnp.float32)
    beta = 0.1 * jax.random.normal(k3, (cout,), jnp.float32)
    mean = 0.1 * jax.random.normal(k4, (cout,), jnp.float32)
    var = jax.random.uniform(k5, (cout,), jnp.float32, 0.5, 1.5)
    return fold_bn(w, gamma, beta, mean, var)


def inception_c_params(key, in_channels, channels_7x7):
    c7 = channels_7x7
    specs = {
        "branch1x1":      (in_channels, 192, 1, 1),
        "branch7x7_1":    (in_channels, c7, 1, 1),
        "branch7x7_2":    (c7, c7, 1, 7),
        "branch7x7_3":    (c7, 192, 7, 1),
        "branch7x7dbl_1": (in_channels, c7, 1, 1),
        "branch7x7dbl_2": (c7, c7, 7, 1),
        "branch7x7dbl_3": (c7, c7, 1, 7),
        "branch7x7dbl_4": (c7, c7, 7, 1),
        "branch7x7dbl_5": (c7, 192, 1, 7),
        "branch_pool":    (in_channels, 192, 1, 1),
    }
    keys = jax.random.split(key, len(specs))
    return {name: init_basic_conv(k, *spec)
            for (name, spec), k in zip(specs.items(), keys)}


def prep_inception_c(raw_params, in_channels):
    """One-time prep of every BasicConv2d, threading the padded channel count
    of each layer's incoming activation through the branch structure."""
    prep = {}

    def do(name, cin_act):
        prep[name] = prep_basic_conv2d(*raw_params[name], cin_act)
        return prep[name]["coutp"]

    do("branch1x1", in_channels)
    c = do("branch7x7_1", in_channels)
    c = do("branch7x7_2", c)
    do("branch7x7_3", c)
    c = do("branch7x7dbl_1", in_channels)
    for name in ("branch7x7dbl_2", "branch7x7dbl_3", "branch7x7dbl_4",
                 "branch7x7dbl_5"):
        c = do(name, c)
    do("branch_pool", in_channels)
    return prep


def inception_c_forward(prep, x_nchw):
    """InceptionC.forward built from BasicConv2d Pallas kernels (NCHW in/out)."""
    x = jnp.transpose(x_nchw, (0, 2, 3, 1)).astype(jnp.bfloat16)   # NHWC bf16

    def crop(y, name):                    # drop the lane-padding channels
        return y[..., :prep[name]["cout"]]

    branch1x1 = basic_conv2d(x, prep["branch1x1"])

    branch7x7 = basic_conv2d(x, prep["branch7x7_1"])
    branch7x7 = basic_conv2d(branch7x7, prep["branch7x7_2"])
    branch7x7 = basic_conv2d(branch7x7, prep["branch7x7_3"])

    branch7x7dbl = x
    for name in ("branch7x7dbl_1", "branch7x7dbl_2", "branch7x7dbl_3",
                 "branch7x7dbl_4", "branch7x7dbl_5"):
        branch7x7dbl = basic_conv2d(branch7x7dbl, prep[name])

    # 3x3 avg pool fused into the branch_pool 1x1 conv (no HBM round trip).
    branch_pool = pool_basic_conv2d(x, prep["branch_pool"])

    # TODO(synk): write each branch directly into its channel offset of the
    # concat buffer (output index_map / input_output_aliases) to save a copy.
    out = jnp.concatenate(
        [crop(branch1x1, "branch1x1"), crop(branch7x7, "branch7x7_3"),
         crop(branch7x7dbl, "branch7x7dbl_5"), crop(branch_pool, "branch_pool")],
        axis=-1)
    return jnp.transpose(out, (0, 3, 1, 2)).astype(jnp.float32)    # NCHW f32


# ----------------------------------------------------------------------------
# Pure-XLA f32 reference (for correctness checking only)
# ----------------------------------------------------------------------------
def _ref_basic_conv2d(x_nhwc, w, bias):
    cout, cin, kh, kw = w.shape
    y = jax.lax.conv_general_dilated(
        x_nhwc, jnp.transpose(w, (2, 3, 1, 0)),
        window_strides=(1, 1),
        padding=[((kh - 1) // 2, (kh - 1) // 2), ((kw - 1) // 2, (kw - 1) // 2)],
        dimension_numbers=("NHWC", "HWIO", "NHWC"),
        precision=jax.lax.Precision.HIGHEST)
    return jnp.maximum(y + bias, 0.0)


def _ref_avg_pool3(x_nhwc):
    N, H, W, C = x_nhwc.shape
    xp = jnp.pad(x_nhwc, ((0, 0), (1, 1), (1, 1), (0, 0)))
    acc = jnp.zeros_like(x_nhwc)
    for dh in range(3):
        for dw in range(3):
            acc = acc + xp[:, dh:dh + H, dw:dw + W, :]
    return acc / 9.0


def inception_c_reference(params, x_nchw):
    x = jnp.transpose(x_nchw, (0, 2, 3, 1)).astype(jnp.float32)

    def bc(name, h):
        return _ref_basic_conv2d(h, *params[name])

    b1 = bc("branch1x1", x)
    b7 = bc("branch7x7_3", bc("branch7x7_2", bc("branch7x7_1", x)))
    bd = x
    for name in ("branch7x7dbl_1", "branch7x7dbl_2", "branch7x7dbl_3",
                 "branch7x7dbl_4", "branch7x7dbl_5"):
        bd = bc(name, bd)
    bp = bc("branch_pool", _ref_avg_pool3(x))
    out = jnp.concatenate([b1, b7, bd, bp], axis=-1)
    return jnp.transpose(out, (0, 3, 1, 2))


if __name__ == "__main__":
    key = jax.random.PRNGKey(0)
    k_param, k_conv, k_x = jax.random.split(key, 3)

    N, H, W = 2, 16, 16
    in_channels, channels_7x7 = 16, 16
    x = jax.random.normal(k_x, (N, in_channels, H, W), jnp.float32)

    # --- the spec module on its own: BasicConv2d(16, 32, kernel_size=3, padding=1)
    w3, b3 = init_basic_conv(k_conv, in_channels, 32, 3, 3)
    prep3 = prep_basic_conv2d(w3, b3, in_channels)     # one-time weight prep

    @jax.jit
    def basic_conv2d_nchw(x_nchw):
        h = jnp.transpose(x_nchw, (0, 2, 3, 1)).astype(jnp.bfloat16)
        y = basic_conv2d(h, prep3)[..., :prep3["cout"]]
        return jnp.transpose(y, (0, 3, 1, 2)).astype(jnp.float32)

    y_bc = jax.block_until_ready(basic_conv2d_nchw(x))
    assert y_bc.shape == (N, 32, H, W), y_bc.shape
    y_bc_ref = jnp.transpose(
        _ref_basic_conv2d(jnp.transpose(x, (0, 2, 3, 1)), w3, b3), (0, 3, 1, 2))
    np.testing.assert_allclose(np.asarray(y_bc), np.asarray(y_bc_ref),
                               rtol=5e-2, atol=5e-2)

    # --- a full InceptionC block built out of the same BasicConv2d kernels ---
    raw_params = inception_c_params(k_param, in_channels, channels_7x7)
    prep = prep_inception_c(raw_params, in_channels)   # one-time weight prep
    fwd = jax.jit(functools.partial(inception_c_forward, prep))
    y = jax.block_until_ready(fwd(x))
    assert y.shape == (N, 192 * 4, H, W), y.shape

    y_ref = jax.block_until_ready(
        jax.jit(functools.partial(inception_c_reference, raw_params))(x))
    np.testing.assert_allclose(np.asarray(y), np.asarray(y_ref),
                               rtol=5e-2, atol=5e-2)

    print("KERNEL_OK")
</pallas_src>

<mosaic_0001>
module attributes {stable_mosaic.version = 11 : i64} {
  func.func @_conv_taps_kernel(%arg0: i32, %arg1: i32, %arg2: memref<1x456x16xbf16, #tpu.memory_space<vmem>>, %arg3: memref<9x16x128xbf16, #tpu.memory_space<vmem>>, %arg4: memref<1x128xf32, #tpu.memory_space<vmem>>, %arg5: memref<1x192x128xbf16, #tpu.memory_space<vmem>>) attributes {dimension_semantics = [#tpu.dimension_semantics<parallel>, #tpu.dimension_semantics<parallel>], iteration_bounds = array<i64: 2, 2>, scalar_prefetch = 0 : i64, scratch_operands = 0 : i64, tpu.core_type = #tpu.core_type<tc>, window_params = [{transform_indices = @transform_0, window_bounds = array<i64: 1, 456, 16>}, {pipeline_mode = #tpu.pipeline_mode<synchronous>, transform_indices = @transform_1, window_bounds = array<i64: 9, 16, 128>}, {pipeline_mode = #tpu.pipeline_mode<synchronous>, transform_indices = @transform_2, window_bounds = array<i64: 1, 128>}, {transform_indices = @transform_3, window_bounds = array<i64: 1, 192, 128>}]} {
    %c192_i32 = arith.constant 192 : i32
    %0 = arith.muli %arg1, %c192_i32 : i32
    %1 = tpu.assume_multiple %0, 8 : i32
    %cst = arith.constant 0.000000e+00 : f32
    %2 = vector.broadcast %cst : f32 to vector<192x128xf32>
    %c0_i32 = arith.constant 0 : i32
    %3 = arith.addi %1, %c0_i32 : i32
    %4 = tpu.assume_multiple %3, 8 : i32
    %c0 = arith.constant 0 : index
    %5 = arith.index_cast %4 : i32 to index
    %c0_0 = arith.constant 0 : index
    %6 = vector.load %arg2[%c0, %5, %c0_0] : memref<1x456x16xbf16, #tpu.memory_space<vmem>>, vector<1x200x16xbf16>
    %7 = vector.shape_cast %6 : vector<1x200x16xbf16> to vector<200x16xbf16>
    %8 = vector.extract_strided_slice %7 {offsets = [0, 0], sizes = [192, 16], strides = [1, 1]} : vector<200x16xbf16> to vector<192x16xbf16>
    %c0_1 = arith.constant 0 : index
    %c0_2 = arith.constant 0 : index
    %c0_3 = arith.constant 0 : index
    %9 = vector.load %arg3[%c0_1, %c0_2, %c0_3] : memref<9x16x128xbf16, #tpu.memory_space<vmem>>, vector<1x16x128xbf16>
    %10 = vector.shape_cast %9 : vector<1x16x128xbf16> to vector<16x128xbf16>
    %cst_4 = arith.constant dense<0.000000e+00> : vector<192x128xf32>
    %11 = tpu.matmul %8, %10, %cst_4 {dimension_numbers = #tpu.dot_dimension_numbers<[1], [0], [0], [1], [0, 0, 1, 1], [], []>} : vector<192x16xbf16>, vector<16x128xbf16>, vector<192x128xf32> -> vector<192x128xf32>
    %12 = arith.addf %2, %11 : vector<192x128xf32>
    %13 = vector.extract_strided_slice %7 {offsets = [1, 0], sizes = [192, 16], strides = [1, 1]} : vector<200x16xbf16> to vector<192x16xbf16>
    %c1 = arith.constant 1 : index
    %c0_5 = arith.constant 0 : index
    %c0_6 = arith.constant 0 : index
    %14 = vector.load %arg3[%c1, %c0_5, %c0_6] : memref<9x16x128xbf16, #tpu.memory_space<vmem>>, vector<1x16x128xbf16>
    %15 = vector.shape_cast %14 : vector<1x16x128xbf16> to vector<16x128xbf16>
    %cst_7 = arith.constant dense<0.000000e+00> : vector<192x128xf32>
    %16 = tpu.matmul %13, %15, %cst_7 {dimension_numbers = #tpu.dot_dimension_numbers<[1], [0], [0], [1], [0, 0, 1, 1], [], []>} : vector<192x16xbf16>, vector<16x128xbf16>, vector<192x128xf32> -> vector<192x128xf32>
    %17 = arith.addf %12, %16 : vector<192x128xf32>
    %18 = vector.extract_strided_slice %7 {offsets = [2, 0], sizes = [192, 16], strides = [1, 1]} : vector<200x16xbf16> to vector<192x16xbf16>
    %c2 = arith.constant 2 : index
    %c0_8 = arith.constant 0 : index
    %c0_9 = arith.constant 0 : index
    %19 = vector.load %arg3[%c2, %c0_8, %c0_9] : memref<9x16x128xbf16, #tpu.memory_space<vmem>>, vector<1x16x128xbf16>
    %20 = vector.shape_cast %19 : vector<1x16x128xbf16> to vector<16x128xbf16>
    %cst_10 = arith.constant dense<0.000000e+00> : vector<192x128xf32>
    %21 = tpu.matmul %18, %20, %cst_10 {dimension_numbers = #tpu.dot_dimension_numbers<[1], [0], [0], [1], [0, 0, 1, 1], [], []>} : vector<192x16xbf16>, vector<16x128xbf16>, vector<192x128xf32> -> vector<192x128xf32>
    %22 = arith.addf %17, %21 : vector<192x128xf32>
    %c24_i32 = arith.constant 24 : i32
    %23 = arith.addi %1, %c24_i32 : i32
    %24 = tpu.assume_multiple %23, 8 : i32
    %c0_11 = arith.constant 0 : index
    %25 = arith.index_cast %24 : i32 to index
    %c0_12 = arith.constant 0 : index
    %26 = vector.load %arg2[%c0_11, %25, %c0_12] : memref<1x456x16xbf16, #tpu.memory_space<vmem>>, vector<1x200x16xbf16>
    %27 = vector.shape_cast %26 : vector<1x200x16xbf16> to vector<200x16xbf16>
    %28 = vector.extract_strided_slice %27 {offsets = [0, 0], sizes = [192, 16], strides = [1, 1]} : vector<200x16xbf16> to vector<192x16xbf16>
    %c3 = arith.constant 3 : index
    %c0_13 = arith.constant 0 : index
    %c0_14 = arith.constant 0 : index
    %29 = vector.load %arg3[%c3, %c0_13, %c0_14] : memref<9x16x128xbf16, #tpu.memory_space<vmem>>, vector<1x16x128xbf16>
    %30 = vector.shape_cast %29 : vector<1x16x128xbf16> to vector<16x128xbf16>
    %cst_15 = arith.constant dense<0.000000e+00> : vector<192x128xf32>
    %31 = tpu.matmul %28, %30, %cst_15 {dimension_numbers = #tpu.dot_dimension_numbers<[1], [0], [0], [1], [0, 0, 1, 1], [], []>} : vector<192x16xbf16>, vector<16x128xbf16>, vector<192x128xf32> -> vector<192x128xf32>
    %32 = arith.addf %22, %31 : vector<192x128xf32>
    %33 = vector.extract_strided_slice %27 {offsets = [1, 0], sizes = [192, 16], strides = [1, 1]} : vector<200x16xbf16> to vector<192x16xbf16>
    %c4 = arith.constant 4 : index
    %c0_16 = arith.constant 0 : index
    %c0_17 = arith.constant 0 : index
    %34 = vector.load %arg3[%c4, %c0_16, %c0_17] : memref<9x16x128xbf16, #tpu.memory_space<vmem>>, vector<1x16x128xbf16>
    %35 = vector.shape_cast %34 : vector<1x16x128xbf16> to vector<16x128xbf16>
    %cst_18 = arith.constant dense<0.000000e+00> : vector<192x128xf32>
    %36 = tpu.matmul %33, %35, %cst_18 {dimension_numbers = #tpu.dot_dimension_numbers<[1], [0], [0], [1], [0, 0, 1, 1], [], []>} : vector<192x16xbf16>, vector<16x128xbf16>, vector<192x128xf32> -> vector<192x128xf32>
    %37 = arith.addf %32, %36 : vector<192x128xf32>
    %38 = vector.extract_strided_slice %27 {offsets = [2, 0], sizes = [192, 16], strides = [1, 1]} : vector<200x16xbf16> to vector<192x16xbf16>
    %c5 = arith.constant 5 : index
    %c0_19 = arith.constant 0 : index
    %c0_20 = arith.constant 0 : index
    %39 = vector.load %arg3[%c5, %c0_19, %c0_20] : memref<9x16x128xbf16, #tpu.memory_space<vmem>>, vector<1x16x128xbf16>
    %40 = vector.shape_cast %39 : vector<1x16x128xbf16> to vector<16x128xbf16>
    %cst_21 = arith.constant dense<0.000000e+00> : vector<192x128xf32>
    %41 = tpu.matmul %38, %40, %cst_21 {dimension_numbers = #tpu.dot_dimension_numbers<[1], [0], [0], [1], [0, 0, 1, 1], [], []>} : vector<192x16xbf16>, vector<16x128xbf16>, vector<192x128xf32> -> vector<192x128xf32>
    %42 = arith.addf %37, %41 : vector<192x128xf32>
    %c48_i32 = arith.constant 48 : i32
    %43 = arith.addi %1, %c48_i32 : i32
    %44 = tpu.assume_multiple %43, 8 : i32
    %c0_22 = arith.constant 0 : index
    %45 = arith.index_cast %44 : i32 to index
    %c0_23 = arith.constant 0 : index
    %46 = vector.load %arg2[%c0_22, %45, %c0_23] : memref<1x456x16xbf16, #tpu.memory_space<vmem>>, vector<1x200x16xbf16>
    %47 = vector.shape_cast %46 : vector<1x200x16xbf16> to vector<200x16xbf16>
    %48 = vector.extract_strided_slice %47 {offsets = [0, 0], sizes = [192, 16], strides = [1, 1]} : vector<200x16xbf16> to vector<192x16xbf16>
    %c6 = arith.constant 6 : index
    %c0_24 = arith.constant 0 : index
    %c0_25 = arith.constant 0 : index
    %49 = vector.load %arg3[%c6, %c0_24, %c0_25] : memref<9x16x128xbf16, #tpu.memory_space<vmem>>, vector<1x16x128xbf16>
    %50 = vector.shape_cast %49 : vector<1x16x128xbf16> to vector<16x128xbf16>
    %cst_26 = arith.constant dense<0.000000e+00> : vector<192x128xf32>
    %51 = tpu.matmul %48, %50, %cst_26 {dimension_numbers = #tpu.dot_dimension_numbers<[1], [0], [0], [1], [0, 0, 1, 1], [], []>} : vector<192x16xbf16>, vector<16x128xbf16>, vector<192x128xf32> -> vector<192x128xf32>
    %52 = arith.addf %42, %51 : vector<192x128xf32>
    %53 = vector.extract_strided_slice %47 {offsets = [1, 0], sizes = [192, 16], strides = [1, 1]} : vector<200x16xbf16> to vector<192x16xbf16>
    %c7 = arith.constant 7 : index
    %c0_27 = arith.constant 0 : index
    %c0_28 = arith.constant 0 : index
    %54 = vector.load %arg3[%c7, %c0_27, %c0_28] : memref<9x16x128xbf16, #tpu.memory_space<vmem>>, vector<1x16x128xbf16>
    %55 = vector.shape_cast %54 : vector<1x16x128xbf16> to vector<16x128xbf16>
    %cst_29 = arith.constant dense<0.000000e+00> : vector<192x128xf32>
    %56 = tpu.matmul %53, %55, %cst_29 {dimension_numbers = #tpu.dot_dimension_numbers<[1], [0], [0], [1], [0, 0, 1, 1], [], []>} : vector<192x16xbf16>, vector<16x128xbf16>, vector<192x128xf32> -> vector<192x128xf32>
    %57 = arith.addf %52, %56 : vector<192x128xf32>
    %58 = vector.extract_strided_slice %47 {offsets = [2, 0], sizes = [192, 16], strides = [1, 1]} : vector<200x16xbf16> to vector<192x16xbf16>
    %c8 = arith.constant 8 : index
    %c0_30 = arith.constant 0 : index
    %c0_31 = arith.constant 0 : index
    %59 = vector.load %arg3[%c8, %c0_30, %c0_31] : memref<9x16x128xbf16, #tpu.memory_space<vmem>>, vector<1x16x128xbf16>
    %60 = vector.shape_cast %59 : vector<1x16x128xbf16> to vector<16x128xbf16>
    %cst_32 = arith.constant dense<0.000000e+00> : vector<192x128xf32>
    %61 = tpu.matmul %58, %60, %cst_32 {dimension_numbers = #tpu.dot_dimension_numbers<[1], [0], [0], [1], [0, 0, 1, 1], [], []>} : vector<192x16xbf16>, vector<16x128xbf16>, vector<192x128xf32> -> vector<192x128xf32>
    %62 = arith.addf %57, %61 : vector<192x128xf32>
    %c0_33 = arith.constant 0 : index
    %c0_34 = arith.constant 0 : index
    %63 = vector.load %arg4[%c0_33, %c0_34] : memref<1x128xf32, #tpu.memory_space<vmem>>, vector<1x128xf32>
    %64 = vector.broadcast %63 : vector<1x128xf32> to vector<192x128xf32>
    %65 = arith.addf %62, %64 : vector<192x128xf32>
    %cst_35 = arith.constant 0.000000e+00 : f32
    %66 = vector.broadcast %cst_35 : f32 to vector<192x128xf32>
    %67 = arith.maximumf %65, %66 : vector<192x128xf32>
    %68 = arith.truncf %67 : vector<192x128xf32> to vector<192x128xbf16>
    %c0_36 = arith.constant 0 : index
    %c0_37 = arith.constant 0 : index
    %c0_38 = arith.constant 0 : index
    %69 = vector.load %arg5[%c0_36, %c0_37, %c0_38] : memref<1x192x128xbf16, #tpu.memory_space<vmem>>, vector<1x192x128xbf16>
    %70 = vector.shape_cast %69 : vector<1x192x128xbf16> to vector<192x128xbf16>
    %71 = vector.shape_cast %68 : vector<192x128xbf16> to vector<1x192x128xbf16>
    tpu.vector_store %arg5[%c0_36, %c0_37, %c0_38], %71 {strides = array<i32>} : memref<1x192x128xbf16, #tpu.memory_space<vmem>>, vector<1x192x128xbf16>,
    return
  }
  func.func @transform_0(%arg0: i32, %arg1: i32) -> (i32, i32, i32) {
    %c0_i32 = arith.constant 0 : i32
    %c0_i32_0 = arith.constant 0 : i32
    %c0_i32_1 = arith.constant 0 : i32
    return %arg0, %c0_i32, %c0_i32_0 : i32, i32, i32
  }
  func.func @transform_1(%arg0: i32, %arg1: i32) -> (i32, i32, i32) {
    %c0_i32 = arith.constant 0 : i32
    %c0_i32_0 = arith.constant 0 : i32
    %c0_i32_1 = arith.constant 0 : i32
    %c0_i32_2 = arith.constant 0 : i32
    return %c0_i32, %c0_i32_0, %c0_i32_1 : i32, i32, i32
  }
  func.func @transform_2(%arg0: i32, %arg1: i32) -> (i32, i32) {
    %c0_i32 = arith.constant 0 : i32
    %c0_i32_0 = arith.constant 0 : i32
    %c0_i32_1 = arith.constant 0 : i32
    return %c0_i32, %c0_i32_0 : i32, i32
  }
  func.func @transform_3(%arg0: i32, %arg1: i32) -> (i32, i32, i32) {
    %c0_i32 = arith.constant 0 : i32
    %c0_i32_0 = arith.constant 0 : i32
    return %arg0, %arg1, %c0_i32 : i32, i32, i32
  }
}

</mosaic_0001>

<llo_original>
// kernel: basic_conv2d_nchw.1
$region0: #{basic_conv2d_nchw.1}
  #allocation0 [shape = 'u32[]', space=smem, size = 0x4, offset = 0x4, fixed_abs, tag = 'smem constant byte address 0x4 - core index']
  #allocation1 [shape = 'u32[144,128]{1,0:T(1,128)}', space=vmem, size = 0x12000, scoped, tag = 'internal scratch']
  %s0 = inlined_call_operand.vmem [shape: bf16[2,456,16], index: 0, kind: input, shape index: {}]
  %s1 = inlined_call_operand.vmem [shape: bf16[9,16,128], index: 1, kind: input, shape index: {}]
  %s2 = inlined_call_operand.vmem [shape: f32[1,128], index: 2, kind: input, shape index: {}]
  %s3 = inlined_call_operand.vmem [shape: bf16[2,384,128], index: 3, kind: output, shape index: {}]
  %s4 = sld [smem:[#allocation0]]
  $region45: #{basic_conv2d_nchw.1} parent=0
    _
  %s6 = ssub.s32 1, %s4
  %s7 = scalar_select 0, %s6, %s4
  loop: start=0, step=1, limit=6
  $region2: #{basic_conv2d_nchw.1} parent=0 // loop_pre_header
    _
  $region3: #{basic_conv2d_nchw.1} parent=0 // loop_header
    %s9 = sphi 0, %s13
    %p10 = scmp.ge.s32.totalorder %s9, 6
    %s16 = sphi 0, %s28
    %s17 = sphi 0, %s24
    %s18 = sphi 0, %s16
    %s19 = sphi 0, %s17
    %s20 = sphi 0, %s18
    %s21 = sphi 0, %s19
    %s31 = sphi 0, %s33
    %s34 = sphi 0, %s31
    %s35 = sphi 0, %s34
    %s51 = sphi 0, %s35
    %s55 = sphi 0, %s55
    %s57 = sphi 0, %s55
    %s58 = sphi 0, %s57
    %s72 = sphi 0, %s58
    %s76 = sphi 0, %s76
    %s78 = sphi 0, %s76
    %s79 = sphi 0, %s78
    %s93 = sphi 0, %s79
    %s101 = sphi 0, %s103
    %s104 = sphi 0, %s101
    %s105 = sphi 0, %s104
    %s121 = sphi 0, %s105
  $region4: #{basic_conv2d_nchw.1} parent=0 // loop_header_branch
    %12 = sbr.rel (%p10) target = $region8
  $region5: #{basic_conv2d_nchw.1} parent=0 // loop_body
    %s14 = ssub.s32 %s9, 1
    %s15 = ssub.s32 %s9, 2
    %s22 = sadd.s32 1, %s17
    %p23 = scmp.ge.s32.totalorder %s22, 2
    %s24 = scalar_select %p23, 0, %s22
    %s25 = sadd.s32 1, %s16
    %s26 = scalar_select %p23, %s25, %s16
    %p27 = scmp.ge.s32.totalorder %s26, 2
    %s28 = scalar_select %p27, 0, %s26
    %s29 = ssub.s32 %s16, %s28
    %p30 = scmp.eq.s32.totalorder %s29, 0
    %s32 = sadd.s32 %s31, 1
    %s33 = scalar_select %p30, %s31, %s32
    %p36 = pneg %p30
    %p37 = scmp.eq.s32.totalorder %s9, 3
    %p38 = por %p36, %p37
    %p39 = scmp.ne.s32.totalorder %s31, %s34
    %p40 = scmp.eq.s32.totalorder %s9, 0
    %p41 = por %p39, %p40
    %p42 = scmp.ne.s32.totalorder %s31, %s34
    %p43 = scmp.eq.s32.totalorder %s14, 3
    %p44 = por %p42, %p43
    %p45 = scmp.ne.s32.totalorder %s34, %s35
    %p46 = scmp.eq.s32.totalorder %s14, 0
    %p47 = por %p45, %p46
    %p48 = scmp.ne.s32.totalorder %s34, %s35
    %p49 = scmp.eq.s32.totalorder %s15, 3
    %p50 = por %p48, %p49
    %p52 = scmp.ne.s32.totalorder %s35, %s51
    %p53 = scmp.eq.s32.totalorder %s15, 0
    %p54 = por %p52, %p53
    %s56 = sadd.s32 %s55, 1
    %p59 = scmp.eq.s32.totalorder %s9, 3
    %p60 = scmp.ne.s32.totalorder %s55, %s57
    %p61 = scmp.eq.s32.totalorder %s9, 0
    %p62 = por %p60, %p61
    %p63 = scmp.ne.s32.totalorder %s55, %s57
    %p64 = scmp.eq.s32.totalorder %s14, 3
    %p65 = por %p63, %p64
    %p66 = scmp.ne.s32.totalorder %s57, %s58
    %p67 = scmp.eq.s32.totalorder %s14, 0
    %p68 = por %p66, %p67
    %p69 = scmp.ne.s32.totalorder %s57, %s58
    %p70 = scmp.eq.s32.totalorder %s15, 3
    %p71 = por %p69, %p70
    %p73 = scmp.ne.s32.totalorder %s58, %s72
    %p74 = scmp.eq.s32.totalorder %s15, 0
    %p75 = por %p73, %p74
    %s77 = sadd.s32 %s76, 1
    %p80 = scmp.eq.s32.totalorder %s9, 3
    %p81 = scmp.ne.s32.totalorder %s76, %s78
    %p82 = scmp.eq.s32.totalorder %s9, 0
    %p83 = por %p81, %p82
    %p84 = scmp.ne.s32.totalorder %s76, %s78
    %p85 = scmp.eq.s32.totalorder %s14, 3
    %p86 = por %p84, %p85
    %p87 = scmp.ne.s32.totalorder %s78, %s79
    %p88 = scmp.eq.s32.totalorder %s14, 0
    %p89 = por %p87, %p88
    %p90 = scmp.ne.s32.totalorder %s78, %s79
    %p91 = scmp.eq.s32.totalorder %s15, 3
    %p92 = por %p90, %p91
    %p94 = scmp.ne.s32.totalorder %s79, %s93
    %p95 = scmp.eq.s32.totalorder %s15, 0
    %p96 = por %p94, %p95
    %s97 = ssub.s32 %s16, %s28
    %s98 = ssub.s32 %s17, %s24
    %s99 = sor.u32 %s97, %s98
    %p100 = scmp.eq.s32.totalorder %s99, 0
    %s102 = sadd.s32 %s101, 1
    %s103 = scalar_select %p100, %s101, %s102
    %p106 = pneg %p100
    %p107 = scmp.eq.s32.totalorder %s9, 3
    %p108 = por %p106, %p107
    %p109 = scmp.ne.s32.totalorder %s101, %s104
    %p110 = scmp.eq.s32.totalorder %s9, 0
    %p111 = por %p109, %p110
    %p112 = scmp.ne.s32.totalorder %s101, %s104
    %p113 = scmp.eq.s32.totalorder %s14, 3
    %p114 = por %p112, %p113
    %p115 = scmp.ne.s32.totalorder %s104, %s105
    %p116 = scmp.eq.s32.totalorder %s14, 0
    %p117 = por %p115, %p116
    %p118 = scmp.ne.s32.totalorder %s104, %s105
    %p119 = scmp.eq.s32.totalorder %s15, 3
    %p120 = por %p118, %p119
    %p122 = scmp.ne.s32.totalorder %s105, %s121
    %p123 = scmp.eq.s32.totalorder %s15, 0
    %p124 = por %p122, %p123
    %p125 = scmp.le.s32.totalorder 1, %s9
    %p126 = scmp.lt.s32.totalorder %s9, 5
    %p127 = pnand %p125, %p126
    %p128 = pneg %p127
    // Predicated region
    $region9: #{basic_conv2d_nchw.1} parent=5 // pred_check
      _
    $region10: #{basic_conv2d_nchw.1} parent=5 // pred_check_branch
      %130 = sbr.rel (%p127) target = $region12
    $region11: #{basic_conv2d_nchw.1} parent=5 // pred_region
      %s131 = ssub.s32 %s9, 1
      // Predicated region
      $region13: #{basic_conv2d_nchw.1} parent=11 // pred_check
        %p132 = pneg %p68
      $region14: #{basic_conv2d_nchw.1} parent=11 // pred_check_branch
        %134 = sbr.rel (%p132) target = $region16
      $region15: #{basic_conv2d_nchw.1} parent=11 // pred_region
        _
      $region16: #{basic_conv2d_nchw.1} parent=11 // pred_fallthru
        _
      // Predicated region
      $region17: #{basic_conv2d_nchw.1} parent=11 // pred_check
        %p135 = pneg %p89
      $region18: #{basic_conv2d_nchw.1} parent=11 // pred_check_branch
        %137 = sbr.rel (%p135) target = $region20
      $region19: #{basic_conv2d_nchw.1} parent=11 // pred_region
        _
      $region20: #{basic_conv2d_nchw.1} parent=11 // pred_fallthru
        _
    $region12: #{basic_conv2d_nchw.1} parent=5 // pred_fallthru
      _
    %p138 = scmp.lt.s32.totalorder %s9, 4
    // Predicated region
    $region21: #{basic_conv2d_nchw.1} parent=5 // pred_check
      %p139 = pneg %p138
    $region22: #{basic_conv2d_nchw.1} parent=5 // pred_check_branch
      %141 = sbr.rel (%p139) target = $region24
    $region23: #{basic_conv2d_nchw.1} parent=5 // pred_region
      // Predicated region
      $region25: #{basic_conv2d_nchw.1} parent=23 // pred_check
        %p142 = pneg %p41
      $region26: #{basic_conv2d_nchw.1} parent=23 // pred_check_branch
        %144 = sbr.rel (%p142) target = $region28
      $region27: #{basic_conv2d_nchw.1} parent=23 // pred_region
        %p145 = scmp.lt.s32.totalorder %s16, 1
        %s146 = scalar_select %p145, %s16, 1
        %s147 = smul.addr %s146, 57
        %s148 = smul.addr %s147, 4
        %s149 = scalar_lea.vmem %s0, %s148
      $region28: #{basic_conv2d_nchw.1} parent=23 // pred_fallthru
        _
    $region24: #{basic_conv2d_nchw.1} parent=5 // pred_fallthru
      _
    %p150 = scmp.le.s32.totalorder 1, %s9
    %p151 = scmp.lt.s32.totalorder %s9, 5
    %p152 = pnand %p150, %p151
    %p153 = pneg %p152
    // Predicated region
    $region29: #{basic_conv2d_nchw.1} parent=5 // pred_check
      _
    $region30: #{basic_conv2d_nchw.1} parent=5 // pred_check_branch
      %155 = sbr.rel (%p152) target = $region32
    $region31: #{basic_conv2d_nchw.1} parent=5 // pred_region
      %s156 = ssub.s32 %s9, 1
      %p157 = scmp.lt.s32.totalorder %s18, 1
      %s158 = scalar_select %p157, %s18, 1
      %s159 = smul.addr %s158, 57
      %s160 = smul.addr %s159, 4
      %s161 = scalar_lea.vmem %s0, %s160
      %p162 = pneg %p47
      %p163 = pneg %p44
      %p164 = pneg %p68
      %p165 = pneg %p65
      %p166 = pneg %p89
      %p167 = pneg %p86
      %p168 = pneg %p117
      %p169 = pneg %p114
      %s170 = smul.u32 24, %s19
      %p171 = scmp.lt.s32.totalorder %s18, 1
      %s172 = scalar_select %p171, %s18, 1
      %p173 = scmp.lt.s32.totalorder %s170, 47
      %s174 = scalar_select %p173, %s170, 47
      %s175 = smul.addr %s172, 48
      %s176 = sadd.s32 %s174, %s175
      %s177 = smul.addr %s176, 4
      %s178 = scalar_lea.vmem %s3, %s177
      %p179 = scmp.lt.s32.totalorder %s18, 1
      %s180 = scalar_select %p179, %s18, 1
      %s181 = smul.addr %s180, 57
      %s182 = smul.addr %s181, 4
      %s183 = scalar_lea.vmem %s0, %s182
      %s184 = smul.u32 24, %s19
      %p185 = scmp.lt.s32.totalorder %s18, 1
      %s186 = scalar_select %p185, %s18, 1
      %p187 = scmp.lt.s32.totalorder %s184, 47
      %s188 = scalar_select %p187, %s184, 47
      %s189 = smul.addr %s186, 48
      %s190 = sadd.s32 %s188, %s189
      %s191 = smul.addr %s190, 4
      %s192 = scalar_lea.vmem %s3, %s191
      %s193 = smul.u32 24, %s19
      %s195 = smul.u32 %s19, 192
      %s196 = sshra.s32 %s195, 3
      %s197 = sand.u32 %s195, 7
      %s198 = smul.addr %s196, 4
      %s199 = scalar_lea.vmem %s183, %s198
      %v200 = vld [vmem:[%s199] sm:$0xf]
      %v201 = vld [vmem:[%s199 + $0x4] sm:$0xf]
      %v202 = vld [vmem:[%s199 + $0x8] sm:$0xf]
      %v203 = vld [vmem:[%s199 + $0xc] sm:$0xf]
      %v204 = vld [vmem:[%s199 + $0x10] sm:$0xf]
      %v205 = vld [vmem:[%s199 + $0x14] sm:$0xf]
      %v206 = vld [vmem:[%s199 + $0x18] sm:$0xf]
      %v207 = vld [vmem:[%s199 + $0x1c] sm:$0xf]
      %v208 = vld [vmem:[%s199 + $0x20] sm:$0xf]
      %v209 = vld [vmem:[%s199 + $0x24] sm:$0xf]
      %v210 = vld [vmem:[%s199 + $0x28] sm:$0xf]
      %v211 = vld [vmem:[%s199 + $0x2c] sm:$0xf]
      %v212 = vld [vmem:[%s199 + $0x30] sm:$0xf]
      %v213 = vld [vmem:[%s199 + $0x34] sm:$0xf]
      %v214 = vld [vmem:[%s199 + $0x38] sm:$0xf]
      %v215 = vld [vmem:[%s199 + $0x3c] sm:$0xf]
      %v216 = vld [vmem:[%s199 + $0x40] sm:$0xf]
      %v217 = vld [vmem:[%s199 + $0x44] sm:$0xf]
      %v218 = vld [vmem:[%s199 + $0x48] sm:$0xf]
      %v219 = vld [vmem:[%s199 + $0x4c] sm:$0xf]
      %v220 = vld [vmem:[%s199 + $0x50] sm:$0xf]
      %v221 = vld [vmem:[%s199 + $0x54] sm:$0xf]
      %v222 = vld [vmem:[%s199 + $0x58] sm:$0xf]
      %v223 = vld [vmem:[%s199 + $0x5c] sm:$0xf]
      %v224 = vld [vmem:[%s199 + $0x60] sm:$0xf]
      %v225 = vld [vmem:[%s1] sm:$0xf]
      %v226 = vld [vmem:[%s1 + $0x4] sm:$0xf]
      %s227 = scalar_lea.vmem %s1, 8
      %v228 = vld [vmem:[%s227] sm:$0xf]
      %v229 = vld [vmem:[%s227 + $0x4] sm:$0xf]
      %v255 = vunpack.c.l.b16 %v200
      %v256 = vunpack.c.l.b16 %v201
      %v257 = vunpack.c.l.b16 %v202
      %v258 = vunpack.c.l.b16 %v203
      %v259 = vunpack.c.l.b16 %v204
      %v260 = vunpack.c.l.b16 %v205
      %v261 = vunpack.c.l.b16 %v206
      %v262 = vunpack.c.l.b16 %v207
      %v263 = vunpack.c.l.b16 %v208
      %v264 = vunpack.c.l.b16 %v209
      %v265 = vunpack.c.l.b16 %v210
      %v266 = vunpack.c.l.b16 %v211
      %v267 = vunpack.c.l.b16 %v212
      %v268 = vunpack.c.l.b16 %v213
      %v269 = vunpack.c.l.b16 %v214
      %v270 = vunpack.c.l.b16 %v215
      %v271 = vunpack.c.l.b16 %v216
      %v272 = vunpack.c.l.b16 %v217
      %v273 = vunpack.c.l.b16 %v218
      %v274 = vunpack.c.l.b16 %v219
      %v275 = vunpack.c.l.b16 %v220
      %v276 = vunpack.c.l.b16 %v221
      %v277 = vunpack.c.l.b16 %v222
      %v278 = vunpack.c.l.b16 %v223
      %v279 = vunpack.c.l.b16 %v224
      %v280 = vpack.c.b16 %v256, %v255
      %v281 = vpack.c.b16 %v258, %v257
      %v282 = vpack.c.b16 %v260, %v259
      %v283 = vpack.c.b16 %v262, %v261
      %v284 = vpack.c.b16 %v264, %v263
      %v285 = vpack.c.b16 %v266, %v265
      %v286 = vpack.c.b16 %v268, %v267
      %v287 = vpack.c.b16 %v270, %v269
      %v288 = vpack.c.b16 %v272, %v271
      %v289 = vpack.c.b16 %v274, %v273
      %v290 = vpack.c.b16 %v276, %v275
      %v291 = vpack.c.b16 %v278, %v277
      %v292 = vpack.c.b16 %v279, %v279
      %vm293 = vsmask.f32 7424
      %v295 = vshrl.u32 %v280, 16
      %v297 = vshll.u32 %v280, 16
      %v299 = vrot.slane %v297, 1
      %v300 = vor.u32 %v295, %v299
      %v302 = vshll.u32 %v281, 16
      %v304 = vrot.slane %v302, 1
      %v305 = vsel %vm293, %v300, %v304
      %v306 = vshrl.u32 %v281, 16
      %v308 = vor.u32 %v306, %v304
      %v310 = vshll.u32 %v282, 16
      %v312 = vrot.slane %v310, 1
      %v313 = vsel %vm293, %v308, %v312
      %v314 = vshrl.u32 %v282, 16
      %v316 = vor.u32 %v314, %v312
      %v318 = vshll.u32 %v283, 16
      %v320 = vrot.slane %v318, 1
      %v321 = vsel %vm293, %v316, %v320
      %v322 = vshrl.u32 %v283, 16
      %v324 = vor.u32 %v322, %v320
      %v326 = vshll.u32 %v284, 16
      %v328 = vrot.slane %v326, 1
      %v329 = vsel %vm293, %v324, %v328
      %v330 = vshrl.u32 %v284, 16
      %v332 = vor.u32 %v330, %v328
      %v334 = vshll.u32 %v285, 16
      %v336 = vrot.slane %v334, 1
      %v337 = vsel %vm293, %v332, %v336
      %v338 = vshrl.u32 %v285, 16
      %v340 = vor.u32 %v338, %v336
      %v342 = vshll.u32 %v286, 16
      %v344 = vrot.slane %v342, 1
      %v345 = vsel %vm293, %v340, %v344
      %v346 = vshrl.u32 %v286, 16
      %v348 = vor.u32 %v346, %v344
      %v350 = vshll.u32 %v287, 16
      %v352 = vrot.slane %v350, 1
      %v353 = vsel %vm293, %v348, %v352
      %v354 = vshrl.u32 %v287, 16
      %v356 = vor.u32 %v354, %v352
      %v358 = vshll.u32 %v288, 16
      %v360 = vrot.slane %v358, 1
      %v361 = vsel %vm293, %v356, %v360
      %v362 = vshrl.u32 %v288, 16
      %v364 = vor.u32 %v362, %v360
      %v366 = vshll.u32 %v289, 16
      %v368 = vrot.slane %v366, 1
      %v369 = vsel %vm293, %v364, %v368
      %v370 = vshrl.u32 %v289, 16
      %v372 = vor.u32 %v370, %v368
      %v374 = vshll.u32 %v290, 16
      %v376 = vrot.slane %v374, 1
      %v377 = vsel %vm293, %v372, %v376
      %v378 = vshrl.u32 %v290, 16
      %v380 = vor.u32 %v378, %v376
      %v382 = vshll.u32 %v291, 16
      %v384 = vrot.slane %v382, 1
      %v385 = vsel %vm293, %v380, %v384
      %v386 = vshrl.u32 %v291, 16
      %v388 = vor.u32 %v386, %v384
      %v390 = vshll.u32 %v292, 16
      %v392 = vrot.slane %v390, 1
      %v393 = vsel %vm293, %v388, %v392
      %v396 = vunpack.c.l.b16 %v228
      %v397 = vunpack.c.l.b16 %v229
      %v398 = vpack.c.b16 %v397, %v396
      %vm400 = vcmask 130048
      %v402 = vsel %vm400, %v305, 0
      %v405 = vsel %vm400, %v313, 0
      %v408 = vsel %vm400, %v321, 0
      %v411 = vsel %vm400, %v329, 0
      %v414 = vsel %vm400, %v337, 0
      %v417 = vsel %vm400, %v345, 0
      %v420 = vsel %vm400, %v353, 0
      %v423 = vsel %vm400, %v361, 0
      %v426 = vsel %vm400, %v369, 0
      %v429 = vsel %vm400, %v377, 0
      %v432 = vsel %vm400, %v385, 0
      %v435 = vsel %vm400, %v393, 0
      %437 = vmatprep.subr.bf16.mxu0 0
      %438 = vmatpush1.bf16.msra.mxu0 0
      %439 = vmatprep.subr.bf16.mxu0 0
      %440 = vmatpush1.bf16.msra.mxu0 0
      %441 = vmatprep.subr.bf16.mxu0 0
      %442 = vmatpush1.bf16.msra.mxu0 0
      %443 = vmatprep.subr.bf16.mxu0 0
      %444 = vmatpush1.bf16.msra.mxu0 0
      %445 = vmatprep.subr.bf16.mxu0 0
      %446 = vmatpush1.bf16.msra.mxu0 0
      %447 = vmatprep.subr.bf16.mxu0 0
      %448 = vmatpush1.bf16.msra.mxu0 0
      %449 = vmatprep.subr.bf16.mxu0 0
      %450 = vmatpush1.bf16.msra.mxu0 0
      %451 = vmatprep.subr.bf16.mxu0 0
      %452 = vmatpush1.bf16.msra.mxu0 %v398
      %453 = vmatprep.subr.bf16.mxu0 0
      %454 = vmatpush2.bf16.msra.mxu0 0
      %455 = vmatprep.subr.bf16.mxu0 0
      %456 = vmatpush2.bf16.msra.mxu0 0
      %457 = vmatprep.subr.bf16.mxu0 0
      %458 = vmatpush2.bf16.msra.mxu0 0
      %459 = vmatprep.subr.bf16.mxu0 0
      %460 = vmatpush2.bf16.msra.mxu0 0
      %461 = vmatprep.subr.bf16.mxu0 0
      %462 = vmatpush2.bf16.msra.mxu0 0
      %463 = vmatprep.subr.bf16.mxu0 0
      %464 = vmatpush2.bf16.msra.mxu0 0
      %465 = vmatprep.subr.bf16.mxu0 0
      %466 = vmatpush2.bf16.msra.mxu0 0
      %467 = vmatprep.subr.bf16.mxu0 0
      %468 = vmatpush2.bf16.msra.mxu0 0
      %469 = vmatprep.mubr.bf16.mxu0 0
      %470 = vmatmul.mubr.bf16.gmra.mxu0 %v402
      %v471 = vpop.f32.mrf.mxu0
      %v472 = vadd.f32 0.0, %v471
      %v473 = vpop.f32.mrf.mxu0
      %v474 = vpop.f32.mrf.mxu0
      %v475 = vadd.f32 0.0, %v474
      %v476 = vpop.f32.mrf.mxu0
      %477 = vmatprep.mubr.bf16.mxu0 0
      %478 = vmatmul.mubr.bf16.gmra.mxu0 %v405
      %v479 = vpop.f32.mrf.mxu0
      %v480 = vadd.f32 0.0, %v479
      %v481 = vpop.f32.mrf.mxu0
      %v482 = vpop.f32.mrf.mxu0
      %v483 = vadd.f32 0.0, %v482
      %v484 = vpop.f32.mrf.mxu0
      %485 = vmatprep.mubr.bf16.mxu0 0
      %486 = vmatmul.mubr.bf16.gmra.mxu0 %v408
      %v487 = vpop.f32.mrf.mxu0
      %v488 = vadd.f32 0.0, %v487
      %v489 = vpop.f32.mrf.mxu0
      %v490 = vpop.f32.mrf.mxu0
      %v491 = vadd.f32 0.0, %v490
      %v492 = vpop.f32.mrf.mxu0
      %493 = vmatprep.mubr.bf16.mxu0 0
      %494 = vmatmul.mubr.bf16.gmra.mxu0 %v411
      %v495 = vpop.f32.mrf.mxu0
      %v496 = vadd.f32 0.0, %v495
      %v497 = vpop.f32.mrf.mxu0
      %v498 = vpop.f32.mrf.mxu0
      %v499 = vadd.f32 0.0, %v498
      %v500 = vpop.f32.mrf.mxu0
      %501 = vmatprep.mubr.bf16.mxu0 0
      %502 = vmatmul.mubr.bf16.gmra.mxu0 %v414
      %v503 = vpop.f32.mrf.mxu0
      %v504 = vadd.f32 0.0, %v503
      %v505 = vpop.f32.mrf.mxu0
      %v506 = vpop.f32.mrf.mxu0
      %v507 = vadd.f32 0.0, %v506
      %v508 = vpop.f32.mrf.mxu0
      %509 = vmatprep.mubr.bf16.mxu0 0
      %510 = vmatmul.mubr.bf16.gmra.mxu0 %v417
      %v511 = vpop.f32.mrf.mxu0
      %v512 = vadd.f32 0.0, %v511
      %v513 = vpop.f32.mrf.mxu0
      %v514 = vpop.f32.mrf.mxu0
      %v515 = vadd.f32 0.0, %v514
      %v516 = vpop.f32.mrf.mxu0
      %517 = vmatprep.mubr.bf16.mxu0 0
      %518 = vmatmul.mubr.bf16.gmra.mxu0 %v420
      %v519 = vpop.f32.mrf.mxu0
      %v520 = vadd.f32 0.0, %v519
      %v521 = vpop.f32.mrf.mxu0
      %v522 = vpop.f32.mrf.mxu0
      %v523 = vadd.f32 0.0, %v522
      %v524 = vpop.f32.mrf.mxu0
      %525 = vmatprep.mubr.bf16.mxu0 0
      %526 = vmatmul.mubr.bf16.gmra.mxu0 %v423
      %v527 = vpop.f32.mrf.mxu0
      %v528 = vadd.f32 0.0, %v527
      %v529 = vpop.f32.mrf.mxu0
      %v530 = vpop.f32.mrf.mxu0
      %v531 = vadd.f32 0.0, %v530
      %v532 = vpop.f32.mrf.mxu0
      %533 = vmatprep.mubr.bf16.mxu0 0
      %534 = vmatmul.mubr.bf16.gmra.mxu0 %v426
      %v535 = vpop.f32.mrf.mxu0
      %v536 = vadd.f32 0.0, %v535
      %v537 = vpop.f32.mrf.mxu0
      %v538 = vpop.f32.mrf.mxu0
      %v539 = vadd.f32 0.0, %v538
      %v540 = vpop.f32.mrf.mxu0
      %541 = vmatprep.mubr.bf16.mxu0 0
      %542 = vmatmul.mubr.bf16.gmra.mxu0 %v429
      %v543 = vpop.f32.mrf.mxu0
      %v544 = vadd.f32 0.0, %v543
      %v545 = vpop.f32.mrf.mxu0
      %v546 = vpop.f32.mrf.mxu0
      %v547 = vadd.f32 0.0, %v546
      %v548 = vpop.f32.mrf.mxu0
      %549 = vmatprep.mubr.bf16.mxu0 0
      %550 = vmatmul.mubr.bf16.gmra.mxu0 %v432
      %v551 = vpop.f32.mrf.mxu0
      %v552 = vadd.f32 0.0, %v551
      %v553 = vpop.f32.mrf.mxu0
      %v554 = vpop.f32.mrf.mxu0
      %v555 = vadd.f32 0.0, %v554
      %v556 = vpop.f32.mrf.mxu0
      %557 = vmatprep.mubr.bf16.mxu0 0
      %558 = vmatmul.mubr.bf16.gmra.mxu0 %v435
      %v559 = vpop.f32.mrf.mxu0
      %v560 = vadd.f32 0.0, %v559
      %v561 = vpop.f32.mrf.mxu0
      %v562 = vpop.f32.mrf.mxu0
      %v563 = vadd.f32 0.0, %v562
      %v564 = vpop.f32.mrf.mxu0
      %565 = vdwg.mxu0
      %v568 = vunpack.c.l.b16 %v225
      %v569 = vunpack.c.l.b16 %v226
      %v570 = vpack.c.b16 %v569, %v568
      %v572 = vsel %vm400, %v280, 0
      %v574 = vsel %vm400, %v281, 0
      %v576 = vsel %vm400, %v282, 0
      %v578 = vsel %vm400, %v283, 0
      %v580 = vsel %vm400, %v284, 0
      %v582 = vsel %vm400, %v285, 0
      %v584 = vsel %vm400, %v286, 0
      %v586 = vsel %vm400, %v287, 0
      %v588 = vsel %vm400, %v288, 0
      %v590 = vsel %vm400, %v289, 0
      %v592 = vsel %vm400, %v290, 0
      %v594 = vsel %vm400, %v291, 0
      %596 = vmatprep.subr.bf16.mxu0 0
      %597 = vmatpush1.bf16.msra.mxu0 0
      %598 = vmatprep.subr.bf16.mxu0 0
      %599 = vmatpush1.bf16.msra.mxu0 0
      %600 = vmatprep.subr.bf16.mxu0 0
      %601 = vmatpush1.bf16.msra.mxu0 0
      %602 = vmatprep.subr.bf16.mxu0 0
      %603 = vmatpush1.bf16.msra.mxu0 0
      %604 = vmatprep.subr.bf16.mxu0 0
      %605 = vmatpush1.bf16.msra.mxu0 0
      %606 = vmatprep.subr.bf16.mxu0 0
      %607 = vmatpush1.bf16.msra.mxu0 0
      %608 = vmatprep.subr.bf16.mxu0 0
      %609 = vmatpush1.bf16.msra.mxu0 0
      %610 = vmatprep.subr.bf16.mxu0 0
      %611 = vmatpush1.bf16.msra.mxu0 %v570
      %612 = vmatprep.subr.bf16.mxu0 0
      %613 = vmatpush2.bf16.msra.mxu0 0
      %614 = vmatprep.subr.bf16.mxu0 0
      %615 = vmatpush2.bf16.msra.mxu0 0
      %616 = vmatprep.subr.bf16.mxu0 0
      %617 = vmatpush2.bf16.msra.mxu0 0
      %618 = vmatprep.subr.bf16.mxu0 0
      %619 = vmatpush2.bf16.msra.mxu0 0
      %620 = vmatprep.subr.bf16.mxu0 0
      %621 = vmatpush2.bf16.msra.mxu0 0
      %622 = vmatprep.subr.bf16.mxu0 0
      %623 = vmatpush2.bf16.msra.mxu0 0
      %624 = vmatprep.subr.bf16.mxu0 0
      %625 = vmatpush2.bf16.msra.mxu0 0
      %626 = vmatprep.subr.bf16.mxu0 0
      %627 = vmatpush2.bf16.msra.mxu0 0
      %628 = vmatprep.mubr.bf16.mxu0 0
      %629 = vmatmul.mubr.bf16.gmra.mxu0 %v572
      %v630 = vpop.f32.mrf.mxu0
      %v631 = vadd.f32 %v472, %v630
      %v632 = vpop.f32.mrf.mxu0
      %v633 = vpop.f32.mrf.mxu0
      %v634 = vadd.f32 %v475, %v633
      %v635 = vpop.f32.mrf.mxu0
      %636 = vmatprep.mubr.bf16.mxu0 0
      %637 = vmatmul.mubr.bf16.gmra.mxu0 %v574
      %v638 = vpop.f32.mrf.mxu0
      %v639 = vadd.f32 %v480, %v638
      %v640 = vpop.f32.mrf.mxu0
      %v641 = vpop.f32.mrf.mxu0
      %v642 = vadd.f32 %v483, %v641
      %v643 = vpop.f32.mrf.mxu0
      %644 = vmatprep.mubr.bf16.mxu0 0
      %645 = vmatmul.mubr.bf16.gmra.mxu0 %v576
      %v646 = vpop.f32.mrf.mxu0
      %v647 = vadd.f32 %v488, %v646
      %v648 = vpop.f32.mrf.mxu0
      %v649 = vpop.f32.mrf.mxu0
      %v650 = vadd.f32 %v491, %v649
      %v651 = vpop.f32.mrf.mxu0
      %652 = vmatprep.mubr.bf16.mxu0 0
      %653 = vmatmul.mubr.bf16.gmra.mxu0 %v578
      %v654 = vpop.f32.mrf.mxu0
      %v655 = vadd.f32 %v496, %v654
      %v656 = vpop.f32.mrf.mxu0
      %v657 = vpop.f32.mrf.mxu0
      %v658 = vadd.f32 %v499, %v657
      %v659 = vpop.f32.mrf.mxu0
      %660 = vmatprep.mubr.bf16.mxu0 0
      %661 = vmatmul.mubr.bf16.gmra.mxu0 %v580
      %v662 = vpop.f32.mrf.mxu0
      %v663 = vadd.f32 %v504, %v662
      %v664 = vpop.f32.mrf.mxu0
      %v665 = vpop.f32.mrf.mxu0
      %v666 = vadd.f32 %v507, %v665
      %v667 = vpop.f32.mrf.mxu0
      %668 = vmatprep.mubr.bf16.mxu0 0
      %669 = vmatmul.mubr.bf16.gmra.mxu0 %v582
      %v670 = vpop.f32.mrf.mxu0
      %v671 = vadd.f32 %v512, %v670
      %v672 = vpop.f32.mrf.mxu0
      %v673 = vpop.f32.mrf.mxu0
      %v674 = vadd.f32 %v515, %v673
      %v675 = vpop.f32.mrf.mxu0
      %676 = vmatprep.mubr.bf16.mxu0 0
      %677 = vmatmul.mubr.bf16.gmra.mxu0 %v584
      %v678 = vpop.f32.mrf.mxu0
      %v679 = vadd.f32 %v520, %v678
      %v680 = vpop.f32.mrf.mxu0
      %v681 = vpop.f32.mrf.mxu0
      %v682 = vadd.f32 %v523, %v681
      %v683 = vpop.f32.mrf.mxu0
      %684 = vmatprep.mubr.bf16.mxu0 0
      %685 = vmatmul.mubr.bf16.gmra.mxu0 %v586
      %v686 = vpop.f32.mrf.mxu0
      %v687 = vadd.f32 %v528, %v686
      %v688 = vpop.f32.mrf.mxu0
      %v689 = vpop.f32.mrf.mxu0
      %v690 = vadd.f32 %v531, %v689
      %v691 = vpop.f32.mrf.mxu0
      %692 = vmatprep.mubr.bf16.mxu0 0
      %693 = vmatmul.mubr.bf16.gmra.mxu0 %v588
      %v694 = vpop.f32.mrf.mxu0
      %v695 = vadd.f32 %v536, %v694
      %v696 = vpop.f32.mrf.mxu0
      %v697 = vpop.f32.mrf.mxu0
      %v698 = vadd.f32 %v539, %v697
      %v699 = vpop.f32.mrf.mxu0
      %700 = vmatprep.mubr.bf16.mxu0 0
      %701 = vmatmul.mubr.bf16.gmra.mxu0 %v590
      %v702 = vpop.f32.mrf.mxu0
      %v703 = vadd.f32 %v544, %v702
      %v704 = vpop.f32.mrf.mxu0
      %v705 = vpop.f32.mrf.mxu0
      %v706 = vadd.f32 %v547, %v705
      %v707 = vpop.f32.mrf.mxu0
      %708 = vmatprep.mubr.bf16.mxu0 0
      %709 = vmatmul.mubr.bf16.gmra.mxu0 %v592
      %v710 = vpop.f32.mrf.mxu0
      %v711 = vadd.f32 %v552, %v710
      %v712 = vpop.f32.mrf.mxu0
      %v713 = vpop.f32.mrf.mxu0
      %v714 = vadd.f32 %v555, %v713
      %v715 = vpop.f32.mrf.mxu0
      %716 = vmatprep.mubr.bf16.mxu0 0
      %717 = vmatmul.mubr.bf16.gmra.mxu0 %v594
      %v718 = vpop.f32.mrf.mxu0
      %v719 = vadd.f32 %v560, %v718
      %v720 = vpop.f32.mrf.mxu0
      %v721 = vpop.f32.mrf.mxu0
      %v722 = vadd.f32 %v563, %v721
      %v723 = vpop.f32.mrf.mxu0
      %724 = vdwg.mxu0
      %s725 = scalar_lea.vmem %s1, 16
      %v726 = vld [vmem:[%s725] sm:$0xf]
      %v727 = vld [vmem:[%s725 + $0x4] sm:$0xf]
      %vm728 = vcmask 1046528
      %v729 = vrot.slane %v280, 1
      %v730 = vrot.slane %v281, 1
      %v731 = vsel %vm728, %v729, %v730
      %v732 = vrot.slane %v282, 1
      %v733 = vsel %vm728, %v730, %v732
      %v734 = vrot.slane %v283, 1
      %v735 = vsel %vm728, %v732, %v734
      %v736 = vrot.slane %v284, 1
      %v737 = vsel %vm728, %v734, %v736
      %v738 = vrot.slane %v285, 1
      %v739 = vsel %vm728, %v736, %v738
      %v740 = vrot.slane %v286, 1
      %v741 = vsel %vm728, %v738, %v740
      %v742 = vrot.slane %v287, 1
      %v743 = vsel %vm728, %v740, %v742
      %v744 = vrot.slane %v288, 1
      %v745 = vsel %vm728, %v742, %v744
      %v746 = vrot.slane %v289, 1
      %v747 = vsel %vm728, %v744, %v746
      %v748 = vrot.slane %v290, 1
      %v749 = vsel %vm728, %v746, %v748
      %v750 = vrot.slane %v291, 1
      %v751 = vsel %vm728, %v748, %v750
      %v752 = vrot.slane %v292, 1
      %v753 = vsel %vm728, %v750, %v752
      %v756 = vunpack.c.l.b16 %v726
      %v757 = vunpack.c.l.b16 %v727
      %v758 = vpack.c.b16 %v757, %v756
      %v761 = vsel %vm400, %v731, 0
      %v764 = vsel %vm400, %v733, 0
      %v767 = vsel %vm400, %v735, 0
      %v770 = vsel %vm400, %v737, 0
      %v773 = vsel %vm400, %v739, 0
      %v776 = vsel %vm400, %v741, 0
      %v779 = vsel %vm400, %v743, 0
      %v782 = vsel %vm400, %v745, 0
      %v785 = vsel %vm400, %v747, 0
      %v788 = vsel %vm400, %v749, 0
      %v791 = vsel %vm400, %v751, 0
      %v794 = vsel %vm400, %v753, 0
      %796 = vmatprep.subr.bf16.mxu0 0
      %797 = vmatpush1.bf16.msra.mxu0 0
      %798 = vmatprep.subr.bf16.mxu0 0
      %799 = vmatpush1.bf16.msra.mxu0 0
      %800 = vmatprep.subr.bf16.mxu0 0
      %801 = vmatpush1.bf16.msra.mxu0 0
      %802 = vmatprep.subr.bf16.mxu0 0
      %803 = vmatpush1.bf16.msra.mxu0 0
      %804 = vmatprep.subr.bf16.mxu0 0
      %805 = vmatpush1.bf16.msra.mxu0 0
      %806 = vmatprep.subr.bf16.mxu0 0
      %807 = vmatpush1.bf16.msra.mxu0 0
      %808 = vmatprep.subr.bf16.mxu0 0
      %809 = vmatpush1.bf16.msra.mxu0 0
      %810 = vmatprep.subr.bf16.mxu0 0
      %811 = vmatpush1.bf16.msra.mxu0 %v758
      %812 = vmatprep.subr.bf16.mxu0 0
      %813 = vmatpush2.bf16.msra.mxu0 0
      %814 = vmatprep.subr.bf16.mxu0 0
      %815 = vmatpush2.bf16.msra.mxu0 0
      %816 = vmatprep.subr.bf16.mxu0 0
      %817 = vmatpush2.bf16.msra.mxu0 0
      %818 = vmatprep.subr.bf16.mxu0 0
      %819 = vmatpush2.bf16.msra.mxu0 0
      %820 = vmatprep.subr.bf16.mxu0 0
      %821 = vmatpush2.bf16.msra.mxu0 0
      %822 = vmatprep.subr.bf16.mxu0 0
      %823 = vmatpush2.bf16.msra.mxu0 0
      %824 = vmatprep.subr.bf16.mxu0 0
      %825 = vmatpush2.bf16.msra.mxu0 0
      %826 = vmatprep.subr.bf16.mxu0 0
      %827 = vmatpush2.bf16.msra.mxu0 0
      %828 = vmatprep.mubr.bf16.mxu0 0
      %829 = vmatmul.mubr.bf16.gmra.mxu0 %v761
      %v830 = vpop.f32.mrf.mxu0
      %v831 = vadd.f32 0.0, %v830
      %v832 = vpop.f32.mrf.mxu0
      %v833 = vpop.f32.mrf.mxu0
      %v834 = vadd.f32 0.0, %v833
      %v835 = vpop.f32.mrf.mxu0
      %836 = vmatprep.mubr.bf16.mxu0 0
      %837 = vmatmul.mubr.bf16.gmra.mxu0 %v764
      %v838 = vpop.f32.mrf.mxu0
      %v839 = vadd.f32 0.0, %v838
      %v840 = vpop.f32.mrf.mxu0
      %v841 = vpop.f32.mrf.mxu0
      %v842 = vadd.f32 0.0, %v841
      %v843 = vpop.f32.mrf.mxu0
      %844 = vmatprep.mubr.bf16.mxu0 0
      %845 = vmatmul.mubr.bf16.gmra.mxu0 %v767
      %v846 = vpop.f32.mrf.mxu0
      %v847 = vadd.f32 0.0, %v846
      %v848 = vpop.f32.mrf.mxu0
      %v849 = vpop.f32.mrf.mxu0
      %v850 = vadd.f32 0.0, %v849
      %v851 = vpop.f32.mrf.mxu0
      %852 = vmatprep.mubr.bf16.mxu0 0
      %853 = vmatmul.mubr.bf16.gmra.mxu0 %v770
      %v854 = vpop.f32.mrf.mxu0
      %v855 = vadd.f32 0.0, %v854
      %v856 = vpop.f32.mrf.mxu0
      %v857 = vpop.f32.mrf.mxu0
      %v858 = vadd.f32 0.0, %v857
      %v859 = vpop.f32.mrf.mxu0
      %860 = vmatprep.mubr.bf16.mxu0 0
      %861 = vmatmul.mubr.bf16.gmra.mxu0 %v773
      %v862 = vpop.f32.mrf.mxu0
      %v863 = vadd.f32 0.0, %v862
      %v864 = vpop.f32.mrf.mxu0
      %v865 = vpop.f32.mrf.mxu0
      %v866 = vadd.f32 0.0, %v865
      %v867 = vpop.f32.mrf.mxu0
      %868 = vmatprep.mubr.bf16.mxu0 0
      %869 = vmatmul.mubr.bf16.gmra.mxu0 %v776
      %v870 = vpop.f32.mrf.mxu0
      %v871 = vadd.f32 0.0, %v870
      %v872 = vpop.f32.mrf.mxu0
      %v873 = vpop.f32.mrf.mxu0
      %v874 = vadd.f32 0.0, %v873
      %v875 = vpop.f32.mrf.mxu0
      %876 = vmatprep.mubr.bf16.mxu0 0
      %877 = vmatmul.mubr.bf16.gmra.mxu0 %v779
      %v878 = vpop.f32.mrf.mxu0
      %v879 = vadd.f32 0.0, %v878
      %v880 = vpop.f32.mrf.mxu0
      %v881 = vpop.f32.mrf.mxu0
      %v882 = vadd.f32 0.0, %v881
      %v883 = vpop.f32.mrf.mxu0
      %884 = vmatprep.mubr.bf16.mxu0 0
      %885 = vmatmul.mubr.bf16.gmra.mxu0 %v782
      %v886 = vpop.f32.mrf.mxu0
      %v887 = vadd.f32 0.0, %v886
      %v888 = vpop.f32.mrf.mxu0
      %v889 = vpop.f32.mrf.mxu0
      %v890 = vadd.f32 0.0, %v889
      %v891 = vpop.f32.mrf.mxu0
      %892 = vmatprep.mubr.bf16.mxu0 0
      %893 = vmatmul.mubr.bf16.gmra.mxu0 %v785
      %v894 = vpop.f32.mrf.mxu0
      %v895 = vadd.f32 0.0, %v894
      %v896 = vpop.f32.mrf.mxu0
      %v897 = vpop.f32.mrf.mxu0
      %v898 = vadd.f32 0.0, %v897
      %v899 = vpop.f32.mrf.mxu0
      %900 = vmatprep.mubr.bf16.mxu0 0
      %901 = vmatmul.mubr.bf16.gmra.mxu0 %v788
      %v902 = vpop.f32.mrf.mxu0
      %v903 = vadd.f32 0.0, %v902
      %v904 = vpop.f32.mrf.mxu0
      %v905 = vpop.f32.mrf.mxu0
      %v906 = vadd.f32 0.0, %v905
      %v907 = vpop.f32.mrf.mxu0
      %908 = vmatprep.mubr.bf16.mxu0 0
      %909 = vmatmul.mubr.bf16.gmra.mxu0 %v791
      %v910 = vpop.f32.mrf.mxu0
      %v911 = vadd.f32 0.0, %v910
      %v912 = vpop.f32.mrf.mxu0
      %v913 = vpop.f32.mrf.mxu0
      %v914 = vadd.f32 0.0, %v913
      %v915 = vpop.f32.mrf.mxu0
      %916 = vmatprep.mubr.bf16.mxu0 0
      %917 = vmatmul.mubr.bf16.gmra.mxu0 %v794
      %v918 = vpop.f32.mrf.mxu0
      %v919 = vadd.f32 0.0, %v918
      %v920 = vpop.f32.mrf.mxu0
      %v921 = vpop.f32.mrf.mxu0
      %v922 = vadd.f32 0.0, %v921
      %v923 = vpop.f32.mrf.mxu0
      %924 = vdwg.mxu0
      %v925 = vadd.f32 %v631, %v831
      %v926 = vadd.f32 %v634, %v834
      %v927 = vadd.f32 %v639, %v839
      %v928 = vadd.f32 %v642, %v842
      %v929 = vadd.f32 %v647, %v847
      %v930 = vadd.f32 %v650, %v850
      %v931 = vadd.f32 %v655, %v855
      %v932 = vadd.f32 %v658, %v858
      %v933 = vadd.f32 %v663, %v863
      %v934 = vadd.f32 %v666, %v866
      %v935 = vadd.f32 %v671, %v871
      %v936 = vadd.f32 %v674, %v874
      %v937 = vadd.f32 %v679, %v879
      %v938 = vadd.f32 %v682, %v882
      %v939 = vadd.f32 %v687, %v887
      %v940 = vadd.f32 %v690, %v890
      %v941 = vadd.f32 %v695, %v895
      %v942 = vadd.f32 %v698, %v898
      %v943 = vadd.f32 %v703, %v903
      %v944 = vadd.f32 %v706, %v906
      %v945 = vadd.f32 %v711, %v911
      %v946 = vadd.f32 %v714, %v914
      %v947 = vadd.f32 %v719, %v919
      %v948 = vadd.f32 %v722, %v922
      %s949 = sadd.s32 %s195, 24
      %s950 = sshra.s32 %s949, 3
      %s951 = sand.u32 %s949, 7
      %s952 = smul.addr %s950, 4
      %s953 = scalar_lea.vmem %s183, %s952
      %v954 = vld [vmem:[%s953] sm:$0xf]
      %v955 = vld [vmem:[%s953 + $0x4] sm:$0xf]
      %v956 = vld [vmem:[%s953 + $0x8] sm:$0xf]
      %v957 = vld [vmem:[%s953 + $0xc] sm:$0xf]
      %v958 = vld [vmem:[%s953 + $0x10] sm:$0xf]
      %v959 = vld [vmem:[%s953 + $0x14] sm:$0xf]
      %v960 = vld [vmem:[%s953 + $0x18] sm:$0xf]
      %v961 = vld [vmem:[%s953 + $0x1c] sm:$0xf]
      %v962 = vld [vmem:[%s953 + $0x20] sm:$0xf]
      %v963 = vld [vmem:[%s953 + $0x24] sm:$0xf]
      %v964 = vld [vmem:[%s953 + $0x28] sm:$0xf]
      %v965 = vld [vmem:[%s953 + $0x2c] sm:$0xf]
      %v966 = vld [vmem:[%s953 + $0x30] sm:$0xf]
      %v967 = vld [vmem:[%s953 + $0x34] sm:$0xf]
      %v968 = vld [vmem:[%s953 + $0x38] sm:$0xf]
      %v969 = vld [vmem:[%s953 + $0x3c] sm:$0xf]
      %v970 = vld [vmem:[%s953 + $0x40] sm:$0xf]
      %v971 = vld [vmem:[%s953 + $0x44] sm:$0xf]
      %v972 = vld [vmem:[%s953 + $0x48] sm:$0xf]
      %v973 = vld [vmem:[%s953 + $0x4c] sm:$0xf]
      %v974 = vld [vmem:[%s953 + $0x50] sm:$0xf]
      %v975 = vld [vmem:[%s953 + $0x54] sm:$0xf]
      %v976 = vld [vmem:[%s953 + $0x58] sm:$0xf]
      %v977 = vld [vmem:[%s953 + $0x5c] sm:$0xf]
      %v978 = vld [vmem:[%s953 + $0x60] sm:$0xf]
      %s979 = scalar_lea.vmem %s1, 24
      %v980 = vld [vmem:[%s979] sm:$0xf]
      %v981 = vld [vmem:[%s979 + $0x4] sm:$0xf]
      %v1006 = vunpack.c.l.b16 %v954
      %v1007 = vunpack.c.l.b16 %v955
      %v1008 = vunpack.c.l.b16 %v956
      %v1009 = vunpack.c.l.b16 %v957
      %v1010 = vunpack.c.l.b16 %v958
      %v1011 = vunpack.c.l.b16 %v959
      %v1012 = vunpack.c.l.b16 %v960
      %v1013 = vunpack.c.l.b16 %v961
      %v1014 = vunpack.c.l.b16 %v962
      %v1015 = vunpack.c.l.b16 %v963
      %v1016 = vunpack.c.l.b16 %v964
      %v1017 = vunpack.c.l.b16 %v965
      %v1018 = vunpack.c.l.b16 %v966
      %v1019 = vunpack.c.l.b16 %v967
      %v1020 = vunpack.c.l.b16 %v968
      %v1021 = vunpack.c.l.b16 %v969
      %v1022 = vunpack.c.l.b16 %v970
      %v1023 = vunpack.c.l.b16 %v971
      %v1024 = vunpack.c.l.b16 %v972
      %v1025 = vunpack.c.l.b16 %v973
      %v1026 = vunpack.c.l.b16 %v974
      %v1027 = vunpack.c.l.b16 %v975
      %v1028 = vunpack.c.l.b16 %v976
      %v1029 = vunpack.c.l.b16 %v977
      %v1030 = vpack.c.b16 %v1007, %v1006
      %v1031 = vpack.c.b16 %v1009, %v1008
      %v1032 = vpack.c.b16 %v1011, %v1010
      %v1033 = vpack.c.b16 %v1013, %v1012
      %v1034 = vpack.c.b16 %v1015, %v1014
      %v1035 = vpack.c.b16 %v1017, %v1016
      %v1036 = vpack.c.b16 %v1019, %v1018
      %v1037 = vpack.c.b16 %v1021, %v1020
      %v1038 = vpack.c.b16 %v1023, %v1022
      %v1039 = vpack.c.b16 %v1025, %v1024
      %v1040 = vpack.c.b16 %v1027, %v1026
      %v1041 = vpack.c.b16 %v1029, %v1028
      %v1044 = vunpack.c.l.b16 %v980
      %v1045 = vunpack.c.l.b16 %v981
      %v1046 = vpack.c.b16 %v1045, %v1044
      %v1049 = vsel %vm400, %v1030, 0
      %v1052 = vsel %vm400, %v1031, 0
      %v1055 = vsel %vm400, %v1032, 0
      %v1058 = vsel %vm400, %v1033, 0
      %v1061 = vsel %vm400, %v1034, 0
      %v1064 = vsel %vm400, %v1035, 0
      %v1067 = vsel %vm400, %v1036, 0
      %v1070 = vsel %vm400, %v1037, 0
      %v1073 = vsel %vm400, %v1038, 0
      %v1076 = vsel %vm400, %v1039, 0
      %v1079 = vsel %vm400, %v1040, 0
      %v1082 = vsel %vm400, %v1041, 0
      %1084 = vmatprep.subr.bf16.mxu0 0
      %1085 = vmatpush1.bf16.msra.mxu0 0
      %1086 = vmatprep.subr.bf16.mxu0 0
      %1087 = vmatpush1.bf16.msra.mxu0 0
      %1088 = vmatprep.subr.bf16.mxu0 0
      %1089 = vmatpush1.bf16.msra.mxu0 0
      %1090 = vmatprep.subr.bf16.mxu0 0
      %1091 = vmatpush1.bf16.msra.mxu0 0
      %1092 = vmatprep.subr.bf16.mxu0 0
      %1093 = vmatpush1.bf16.msra.mxu0 0
      %1094 = vmatprep.subr.bf16.mxu0 0
      %1095 = vmatpush1.bf16.msra.mxu0 0
      %1096 = vmatprep.subr.bf16.mxu0 0
      %1097 = vmatpush1.bf16.msra.mxu0 0
      %1098 = vmatprep.subr.bf16.mxu0 0
      %1099 = vmatpush1.bf16.msra.mxu0 %v1046
      %1100 = vmatprep.subr.bf16.mxu0 0
      %1101 = vmatpush2.bf16.msra.mxu0 0
      %1102 = vmatprep.subr.bf16.mxu0 0
      %1103 = vmatpush2.bf16.msra.mxu0 0
      %1104 = vmatprep.subr.bf16.mxu0 0
      %1105 = vmatpush2.bf16.msra.mxu0 0
      %1106 = vmatprep.subr.bf16.mxu0 0
      %1107 = vmatpush2.bf16.msra.mxu0 0
      %1108 = vmatprep.subr.bf16.mxu0 0
      %1109 = vmatpush2.bf16.msra.mxu0 0
      %1110 = vmatprep.subr.bf16.mxu0 0
      %1111 = vmatpush2.bf16.msra.mxu0 0
      %1112 = vmatprep.subr.bf16.mxu0 0
      %1113 = vmatpush2.bf16.msra.mxu0 0
      %1114 = vmatprep.subr.bf16.mxu0 0
      %1115 = vmatpush2.bf16.msra.mxu0 0
      %1116 = vmatprep.mubr.bf16.mxu0 0
      %1117 = vmatmul.mubr.bf16.gmra.mxu0 %v1049
      %v1118 = vpop.f32.mrf.mxu0
      %v1119 = vadd.f32 0.0, %v1118
      %v1120 = vpop.f32.mrf.mxu0
      %v1121 = vpop.f32.mrf.mxu0
      %v1122 = vadd.f32 0.0, %v1121
      %v1123 = vpop.f32.mrf.mxu0
      %1124 = vmatprep.mubr.bf16.mxu0 0
      %1125 = vmatmul.mubr.bf16.gmra.mxu0 %v1052
      %v1126 = vpop.f32.mrf.mxu0
      %v1127 = vadd.f32 0.0, %v1126
      %v1128 = vpop.f32.mrf.mxu0
      %v1129 = vpop.f32.mrf.mxu0
      %v1130 = vadd.f32 0.0, %v1129
      %v1131 = vpop.f32.mrf.mxu0
      %1132 = vmatprep.mubr.bf16.mxu0 0
      %1133 = vmatmul.mubr.bf16.gmra.mxu0 %v1055
      %v1134 = vpop.f32.mrf.mxu0
      %v1135 = vadd.f32 0.0, %v1134
      %v1136 = vpop.f32.mrf.mxu0
      %v1137 = vpop.f32.mrf.mxu0
      %v1138 = vadd.f32 0.0, %v1137
      %v1139 = vpop.f32.mrf.mxu0
      %1140 = vmatprep.mubr.bf16.mxu0 0
      %1141 = vmatmul.mubr.bf16.gmra.mxu0 %v1058
      %v1142 = vpop.f32.mrf.mxu0
      %v1143 = vadd.f32 0.0, %v1142
      %v1144 = vpop.f32.mrf.mxu0
      %v1145 = vpop.f32.mrf.mxu0
      %v1146 = vadd.f32 0.0, %v1145
      %v1147 = vpop.f32.mrf.mxu0
      %1148 = vmatprep.mubr.bf16.mxu0 0
      %1149 = vmatmul.mubr.bf16.gmra.mxu0 %v1061
      %v1150 = vpop.f32.mrf.mxu0
      %v1151 = vadd.f32 0.0, %v1150
      %v1152 = vpop.f32.mrf.mxu0
      %v1153 = vpop.f32.mrf.mxu0
      %v1154 = vadd.f32 0.0, %v1153
      %v1155 = vpop.f32.mrf.mxu0
      %1156 = vmatprep.mubr.bf16.mxu0 0
      %1157 = vmatmul.mubr.bf16.gmra.mxu0 %v1064
      %v1158 = vpop.f32.mrf.mxu0
      %v1159 = vadd.f32 0.0, %v1158
      %v1160 = vpop.f32.mrf.mxu0
      %v1161 = vpop.f32.mrf.mxu0
      %v1162 = vadd.f32 0.0, %v1161
      %v1163 = vpop.f32.mrf.mxu0
      %1164 = vmatprep.mubr.bf16.mxu0 0
      %1165 = vmatmul.mubr.bf16.gmra.mxu0 %v1067
      %v1166 = vpop.f32.mrf.mxu0
      %v1167 = vadd.f32 0.0, %v1166
      %v1168 = vpop.f32.mrf.mxu0
      %v1169 = vpop.f32.mrf.mxu0
      %v1170 = vadd.f32 0.0, %v1169
      %v1171 = vpop.f32.mrf.mxu0
      %1172 = vmatprep.mubr.bf16.mxu0 0
      %1173 = vmatmul.mubr.bf16.gmra.mxu0 %v1070
      %v1174 = vpop.f32.mrf.mxu0
      %v1175 = vadd.f32 0.0, %v1174
      %v1176 = vpop.f32.mrf.mxu0
      %v1177 = vpop.f32.mrf.mxu0
      %v1178 = vadd.f32 0.0, %v1177
      %v1179 = vpop.f32.mrf.mxu0
      %1180 = vmatprep.mubr.bf16.mxu0 0
      %1181 = vmatmul.mubr.bf16.gmra.mxu0 %v1073
      %v1182 = vpop.f32.mrf.mxu0
      %v1183 = vadd.f32 0.0, %v1182
      %v1184 = vpop.f32.mrf.mxu0
      %v1185 = vpop.f32.mrf.mxu0
      %v1186 = vadd.f32 0.0, %v1185
      %v1187 = vpop.f32.mrf.mxu0
      %1188 = vmatprep.mubr.bf16.mxu0 0
      %1189 = vmatmul.mubr.bf16.gmra.mxu0 %v1076
      %v1190 = vpop.f32.mrf.mxu0
      %v1191 = vadd.f32 0.0, %v1190
      %v1192 = vpop.f32.mrf.mxu0
      %v1193 = vpop.f32.mrf.mxu0
      %v1194 = vadd.f32 0.0, %v1193
      %v1195 = vpop.f32.mrf.mxu0
      %1196 = vmatprep.mubr.bf16.mxu0 0
      %1197 = vmatmul.mubr.bf16.gmra.mxu0 %v1079
      %v1198 = vpop.f32.mrf.mxu0
      %v1199 = vadd.f32 0.0, %v1198
      %v1200 = vpop.f32.mrf.mxu0
      %v1201 = vpop.f32.mrf.mxu0
      %v1202 = vadd.f32 0.0, %v1201
      %v1203 = vpop.f32.mrf.mxu0
      %1204 = vmatprep.mubr.bf16.mxu0 0
      %1205 = vmatmul.mubr.bf16.gmra.mxu0 %v1082
      %v1206 = vpop.f32.mrf.mxu0
      %v1207 = vadd.f32 0.0, %v1206
      %v1208 = vpop.f32.mrf.mxu0
      %v1209 = vpop.f32.mrf.mxu0
      %v1210 = vadd.f32 0.0, %v1209
      %v1211 = vpop.f32.mrf.mxu0
      %1212 = vdwg.mxu0
      %v1213 = vadd.f32 %v925, %v1119
      %v1214 = vadd.f32 %v926, %v1122
      %v1215 = vadd.f32 %v927, %v1127
      %v1216 = vadd.f32 %v928, %v1130
      %v1217 = vadd.f32 %v929, %v1135
      %v1218 = vadd.f32 %v930, %v1138
      %v1219 = vadd.f32 %v931, %v1143
      %v1220 = vadd.f32 %v932, %v1146
      %v1221 = vadd.f32 %v933, %v1151
      %v1222 = vadd.f32 %v934, %v1154
      %v1223 = vadd.f32 %v935, %v1159
      %v1224 = vadd.f32 %v936, %v1162
      %v1225 = vadd.f32 %v937, %v1167
      %v1226 = vadd.f32 %v938, %v1170
      %v1227 = vadd.f32 %v939, %v1175
      %v1228 = vadd.f32 %v940, %v1178
      %v1229 = vadd.f32 %v941, %v1183
      %v1230 = vadd.f32 %v942, %v1186
      %v1231 = vadd.f32 %v943, %v1191
      %v1232 = vadd.f32 %v944, %v1194
      %v1233 = vadd.f32 %v945, %v1199
      %v1234 = vadd.f32 %v946, %v1202
      %v1235 = vadd.f32 %v947, %v1207
      %v1236 = vadd.f32 %v948, %v1210
      %s1237 = scalar_lea.vmem %s1, 32
      %v1238 = vld [vmem:[%s1237] sm:$0xf]
      %v1239 = vld [vmem:[%s1237 + $0x4] sm:$0xf]
      %v1241 = vunpack.c.l.b16 %v978
      %v1242 = vpack.c.b16 %v1241, %v1241
      %v1243 = vshrl.u32 %v1030, 16
      %v1245 = vshll.u32 %v1030, 16
      %v1247 = vrot.slane %v1245, 1
      %v1248 = vor.u32 %v1243, %v1247
      %v1249 = vshll.u32 %v1031, 16
      %v1251 = vrot.slane %v1249, 1
      %v1252 = vsel %vm293, %v1248, %v1251
      %v1253 = vshrl.u32 %v1031, 16
      %v1255 = vor.u32 %v1253, %v1251
      %v1256 = vshll.u32 %v1032, 16
      %v1258 = vrot.slane %v1256, 1
      %v1259 = vsel %vm293, %v1255, %v1258
      %v1260 = vshrl.u32 %v1032, 16
      %v1262 = vor.u32 %v1260, %v1258
      %v1263 = vshll.u32 %v1033, 16
      %v1265 = vrot.slane %v1263, 1
      %v1266 = vsel %vm293, %v1262, %v1265
      %v1267 = vshrl.u32 %v1033, 16
      %v1269 = vor.u32 %v1267, %v1265
      %v1270 = vshll.u32 %v1034, 16
      %v1272 = vrot.slane %v1270, 1
      %v1273 = vsel %vm293, %v1269, %v1272
      %v1274 = vshrl.u32 %v1034, 16
      %v1276 = vor.u32 %v1274, %v1272
      %v1277 = vshll.u32 %v1035, 16
      %v1279 = vrot.slane %v1277, 1
      %v1280 = vsel %vm293, %v1276, %v1279
      %v1281 = vshrl.u32 %v1035, 16
      %v1283 = vor.u32 %v1281, %v1279
      %v1284 = vshll.u32 %v1036, 16
      %v1286 = vrot.slane %v1284, 1
      %v1287 = vsel %vm293, %v1283, %v1286
      %v1288 = vshrl.u32 %v1036, 16
      %v1290 = vor.u32 %v1288, %v1286
      %v1291 = vshll.u32 %v1037, 16
      %v1293 = vrot.slane %v1291, 1
      %v1294 = vsel %vm293, %v1290, %v1293
      %v1295 = vshrl.u32 %v1037, 16
      %v1297 = vor.u32 %v1295, %v1293
      %v1298 = vshll.u32 %v1038, 16
      %v1300 = vrot.slane %v1298, 1
      %v1301 = vsel %vm293, %v1297, %v1300
      %v1302 = vshrl.u32 %v1038, 16
      %v1304 = vor.u32 %v1302, %v1300
      %v1305 = vshll.u32 %v1039, 16
      %v1307 = vrot.slane %v1305, 1
      %v1308 = vsel %vm293, %v1304, %v1307
      %v1309 = vshrl.u32 %v1039, 16
      %v1311 = vor.u32 %v1309, %v1307
      %v1312 = vshll.u32 %v1040, 16
      %v1314 = vrot.slane %v1312, 1
      %v1315 = vsel %vm293, %v1311, %v1314
      %v1316 = vshrl.u32 %v1040, 16
      %v1318 = vor.u32 %v1316, %v1314
      %v1319 = vshll.u32 %v1041, 16
      %v1321 = vrot.slane %v1319, 1
      %v1322 = vsel %vm293, %v1318, %v1321
      %v1323 = vshrl.u32 %v1041, 16
      %v1325 = vor.u32 %v1323, %v1321
      %v1327 = vshll.u32 %v1242, 16
      %v1329 = vrot.slane %v1327, 1
      %v1330 = vsel %vm293, %v1325, %v1329
      %v1333 = vunpack.c.l.b16 %v1238
      %v1334 = vunpack.c.l.b16 %v1239
      %v1335 = vpack.c.b16 %v1334, %v1333
      %v1338 = vsel %vm400, %v1252, 0
      %v1341 = vsel %vm400, %v1259, 0
      %v1344 = vsel %vm400, %v1266, 0
      %v1347 = vsel %vm400, %v1273, 0
      %v1350 = vsel %vm400, %v1280, 0
      %v1353 = vsel %vm400, %v1287, 0
      %v1356 = vsel %vm400, %v1294, 0
      %v1359 = vsel %vm400, %v1301, 0
      %v1362 = vsel %vm400, %v1308, 0
      %v1365 = vsel %vm400, %v1315, 0
      %v1368 = vsel %vm400, %v1322, 0
      %v1371 = vsel %vm400, %v1330, 0
      %1373 = vmatprep.subr.bf16.mxu0 0
      %1374 = vmatpush1.bf16.msra.mxu0 0
      %1375 = vmatprep.subr.bf16.mxu0 0
      %1376 = vmatpush1.bf16.msra.mxu0 0
      %1377 = vmatprep.subr.bf16.mxu0 0
      %1378 = vmatpush1.bf16.msra.mxu0 0
      %1379 = vmatprep.subr.bf16.mxu0 0
      %1380 = vmatpush1.bf16.msra.mxu0 0
      %1381 = vmatprep.subr.bf16.mxu0 0
      %1382 = vmatpush1.bf16.msra.mxu0 0
      %1383 = vmatprep.subr.bf16.mxu0 0
      %1384 = vmatpush1.bf16.msra.mxu0 0
      %1385 = vmatprep.subr.bf16.mxu0 0
      %1386 = vmatpush1.bf16.msra.mxu0 0
      %1387 = vmatprep.subr.bf16.mxu0 0
      %1388 = vmatpush1.bf16.msra.mxu0 %v1335
      %1389 = vmatprep.subr.bf16.mxu0 0
      %1390 = vmatpush2.bf16.msra.mxu0 0
      %1391 = vmatprep.subr.bf16.mxu0 0
      %1392 = vmatpush2.bf16.msra.mxu0 0
      %1393 = vmatprep.subr.bf16.mxu0 0
      %1394 = vmatpush2.bf16.msra.mxu0 0
      %1395 = vmatprep.subr.bf16.mxu0 0
      %1396 = vmatpush2.bf16.msra.mxu0 0
      %1397 = vmatprep.subr.bf16.mxu0 0
      %1398 = vmatpush2.bf16.msra.mxu0 0
      %1399 = vmatprep.subr.bf16.mxu0 0
      %1400 = vmatpush2.bf16.msra.mxu0 0
      %1401 = vmatprep.subr.bf16.mxu0 0
      %1402 = vmatpush2.bf16.msra.mxu0 0
      %1403 = vmatprep.subr.bf16.mxu0 0
      %1404 = vmatpush2.bf16.msra.mxu0 0
      %1405 = vmatprep.mubr.bf16.mxu0 0
      %1406 = vmatmul.mubr.bf16.gmra.mxu0 %v1338
      %v1407 = vpop.f32.mrf.mxu0
      %v1408 = vadd.f32 0.0, %v1407
      %v1409 = vpop.f32.mrf.mxu0
      %v1410 = vpop.f32.mrf.mxu0
      %v1411 = vadd.f32 0.0, %v1410
      %v1412 = vpop.f32.mrf.mxu0
      %1413 = vmatprep.mubr.bf16.mxu0 0
      %1414 = vmatmul.mubr.bf16.gmra.mxu0 %v1341
      %v1415 = vpop.f32.mrf.mxu0
      %v1416 = vadd.f32 0.0, %v1415
      %v1417 = vpop.f32.mrf.mxu0
      %v1418 = vpop.f32.mrf.mxu0
      %v1419 = vadd.f32 0.0, %v1418
      %v1420 = vpop.f32.mrf.mxu0
      %1421 = vmatprep.mubr.bf16.mxu0 0
      %1422 = vmatmul.mubr.bf16.gmra.mxu0 %v1344
      %v1423 = vpop.f32.mrf.mxu0
      %v1424 = vadd.f32 0.0, %v1423
      %v1425 = vpop.f32.mrf.mxu0
      %v1426 = vpop.f32.mrf.mxu0
      %v1427 = vadd.f32 0.0, %v1426
      %v1428 = vpop.f32.mrf.mxu0
      %1429 = vmatprep.mubr.bf16.mxu0 0
      %1430 = vmatmul.mubr.bf16.gmra.mxu0 %v1347
      %v1431 = vpop.f32.mrf.mxu0
      %v1432 = vadd.f32 0.0, %v1431
      %v1433 = vpop.f32.mrf.mxu0
      %v1434 = vpop.f32.mrf.mxu0
      %v1435 = vadd.f32 0.0, %v1434
      %v1436 = vpop.f32.mrf.mxu0
      %1437 = vmatprep.mubr.bf16.mxu0 0
      %1438 = vmatmul.mubr.bf16.gmra.mxu0 %v1350
      %v1439 = vpop.f32.mrf.mxu0
      %v1440 = vadd.f32 0.0, %v1439
      %v1441 = vpop.f32.mrf.mxu0
      %v1442 = vpop.f32.mrf.mxu0
      %v1443 = vadd.f32 0.0, %v1442
      %v1444 = vpop.f32.mrf.mxu0
      %1445 = vmatprep.mubr.bf16.mxu0 0
      %1446 = vmatmul.mubr.bf16.gmra.mxu0 %v1353
      %v1447 = vpop.f32.mrf.mxu0
      %v1448 = vadd.f32 0.0, %v1447
      %v1449 = vpop.f32.mrf.mxu0
      %v1450 = vpop.f32.mrf.mxu0
      %v1451 = vadd.f32 0.0, %v1450
      %v1452 = vpop.f32.mrf.mxu0
      %1453 = vmatprep.mubr.bf16.mxu0 0
      %1454 = vmatmul.mubr.bf16.gmra.mxu0 %v1356
      %v1455 = vpop.f32.mrf.mxu0
      %v1456 = vadd.f32 0.0, %v1455
      %v1457 = vpop.f32.mrf.mxu0
      %v1458 = vpop.f32.mrf.mxu0
      %v1459 = vadd.f32 0.0, %v1458
      %v1460 = vpop.f32.mrf.mxu0
      %1461 = vmatprep.mubr.bf16.mxu0 0
      %1462 = vmatmul.mubr.bf16.gmra.mxu0 %v1359
      %v1463 = vpop.f32.mrf.mxu0
      %v1464 = vadd.f32 0.0, %v1463
      %v1465 = vpop.f32.mrf.mxu0
      %v1466 = vpop.f32.mrf.mxu0
      %v1467 = vadd.f32 0.0, %v1466
      %v1468 = vpop.f32.mrf.mxu0
      %1469 = vmatprep.mubr.bf16.mxu0 0
      %1470 = vmatmul.mubr.bf16.gmra.mxu0 %v1362
      %v1471 = vpop.f32.mrf.mxu0
      %v1472 = vadd.f32 0.0, %v1471
      %v1473 = vpop.f32.mrf.mxu0
      %v1474 = vpop.f32.mrf.mxu0
      %v1475 = vadd.f32 0.0, %v1474
      %v1476 = vpop.f32.mrf.mxu0
      %1477 = vmatprep.mubr.bf16.mxu0 0
      %1478 = vmatmul.mubr.bf16.gmra.mxu0 %v1365
      %v1479 = vpop.f32.mrf.mxu0
      %v1480 = vadd.f32 0.0, %v1479
      %v1481 = vpop.f32.mrf.mxu0
      %v1482 = vpop.f32.mrf.mxu0
      %v1483 = vadd.f32 0.0, %v1482
      %v1484 = vpop.f32.mrf.mxu0
      %1485 = vmatprep.mubr.bf16.mxu0 0
      %1486 = vmatmul.mubr.bf16.gmra.mxu0 %v1368
      %v1487 = vpop.f32.mrf.mxu0
      %v1488 = vadd.f32 0.0, %v1487
      %v1489 = vpop.f32.mrf.mxu0
      %v1490 = vpop.f32.mrf.mxu0
      %v1491 = vadd.f32 0.0, %v1490
      %v1492 = vpop.f32.mrf.mxu0
      %1493 = vmatprep.mubr.bf16.mxu0 0
      %1494 = vmatmul.mubr.bf16.gmra.mxu0 %v1371
      %v1495 = vpop.f32.mrf.mxu0
      %v1496 = vadd.f32 0.0, %v1495
      %v1497 = vpop.f32.mrf.mxu0
      %v1498 = vpop.f32.mrf.mxu0
      %v1499 = vadd.f32 0.0, %v1498
      %v1500 = vpop.f32.mrf.mxu0
      %1501 = vdwg.mxu0
      %v1502 = vadd.f32 %v1213, %v1408
      %v1503 = vadd.f32 %v1214, %v1411
      %v1504 = vadd.f32 %v1215, %v1416
      %v1505 = vadd.f32 %v1216, %v1419
      %v1506 = vadd.f32 %v1217, %v1424
      %v1507 = vadd.f32 %v1218, %v1427
      %v1508 = vadd.f32 %v1219, %v1432
      %v1509 = vadd.f32 %v1220, %v1435
      %v1510 = vadd.f32 %v1221, %v1440
      %v1511 = vadd.f32 %v1222, %v1443
      %v1512 = vadd.f32 %v1223, %v1448
      %v1513 = vadd.f32 %v1224, %v1451
      %v1514 = vadd.f32 %v1225, %v1456
      %v1515 = vadd.f32 %v1226, %v1459
      %v1516 = vadd.f32 %v1227, %v1464
      %v1517 = vadd.f32 %v1228, %v1467
      %v1518 = vadd.f32 %v1229, %v1472
      %v1519 = vadd.f32 %v1230, %v1475
      %v1520 = vadd.f32 %v1231, %v1480
      %v1521 = vadd.f32 %v1232, %v1483
      %v1522 = vadd.f32 %v1233, %v1488
      %v1523 = vadd.f32 %v1234, %v1491
      %v1524 = vadd.f32 %v1235, %v1496
      %v1525 = vadd.f32 %v1236, %v1499
      %s1526 = scalar_lea.vmem %s1, 40
      %v1527 = vld [vmem:[%s1526] sm:$0xf]
      %v1528 = vld [vmem:[%s1526 + $0x4] sm:$0xf]
      %v1529 = vrot.slane %v1030, 1
      %v1530 = vrot.slane %v1031, 1
      %v1531 = vsel %vm728, %v1529, %v1530
      %v1532 = vrot.slane %v1032, 1
      %v1533 = vsel %vm728, %v1530, %v1532
      %v1534 = vrot.slane %v1033, 1
      %v1535 = vsel %vm728, %v1532, %v1534
      %v1536 = vrot.slane %v1034, 1
      %v1537 = vsel %vm728, %v1534, %v1536
      %v1538 = vrot.slane %v1035, 1
      %v1539 = vsel %vm728, %v1536, %v1538
      %v1540 = vrot.slane %v1036, 1
      %v1541 = vsel %vm728, %v1538, %v1540
      %v1542 = vrot.slane %v1037, 1
      %v1543 = vsel %vm728, %v1540, %v1542
      %v1544 = vrot.slane %v1038, 1
      %v1545 = vsel %vm728, %v1542, %v1544
      %v1546 = vrot.slane %v1039, 1
      %v1547 = vsel %vm728, %v1544, %v1546
      %v1548 = vrot.slane %v1040, 1
      %v1549 = vsel %vm728, %v1546, %v1548
      %v1550 = vrot.slane %v1041, 1
      %v1551 = vsel %vm728, %v1548, %v1550
      %v1552 = vrot.slane %v1242, 1
      %v1553 = vsel %vm728, %v1550, %v1552
      %v1556 = vunpack.c.l.b16 %v1527
      %v1557 = vunpack.c.l.b16 %v1528
      %v1558 = vpack.c.b16 %v1557, %v1556
      %v1561 = vsel %vm400, %v1531, 0
      %v1564 = vsel %vm400, %v1533, 0
      %v1567 = vsel %vm400, %v1535, 0
      %v1570 = vsel %vm400, %v1537, 0
      %v1573 = vsel %vm400, %v1539, 0
      %v1576 = vsel %vm400, %v1541, 0
      %v1579 = vsel %vm400, %v1543, 0
      %v1582 = vsel %vm400, %v1545, 0
      %v1585 = vsel %vm400, %v1547, 0
      %v1588 = vsel %vm400, %v1549, 0
      %v1591 = vsel %vm400, %v1551, 0
      %v1594 = vsel %vm400, %v1553, 0
      %1596 = vmatprep.subr.bf16.mxu0 0
      %1597 = vmatpush1.bf16.msra.mxu0 0
      %1598 = vmatprep.subr.bf16.mxu0 0
      %1599 = vmatpush1.bf16.msra.mxu0 0
      %1600 = vmatprep.subr.bf16.mxu0 0
      %1601 = vmatpush1.bf16.msra.mxu0 0
      %1602 = vmatprep.subr.bf16.mxu0 0
      %1603 = vmatpush1.bf16.msra.mxu0 0
      %1604 = vmatprep.subr.bf16.mxu0 0
      %1605 = vmatpush1.bf16.msra.mxu0 0
      %1606 = vmatprep.subr.bf16.mxu0 0
      %1607 = vmatpush1.bf16.msra.mxu0 0
      %1608 = vmatprep.subr.bf16.mxu0 0
      %1609 = vmatpush1.bf16.msra.mxu0 0
      %1610 = vmatprep.subr.bf16.mxu0 0
      %1611 = vmatpush1.bf16.msra.mxu0 %v1558
      %1612 = vmatprep.subr.bf16.mxu0 0
      %1613 = vmatpush2.bf16.msra.mxu0 0
      %1614 = vmatprep.subr.bf16.mxu0 0
      %1615 = vmatpush2.bf16.msra.mxu0 0
      %1616 = vmatprep.subr.bf16.mxu0 0
      %1617 = vmatpush2.bf16.msra.mxu0 0
      %1618 = vmatprep.subr.bf16.mxu0 0
      %1619 = vmatpush2.bf16.msra.mxu0 0
      %1620 = vmatprep.subr.bf16.mxu0 0
      %1621 = vmatpush2.bf16.msra.mxu0 0
      %1622 = vmatprep.subr.bf16.mxu0 0
      %1623 = vmatpush2.bf16.msra.mxu0 0
      %1624 = vmatprep.subr.bf16.mxu0 0
      %1625 = vmatpush2.bf16.msra.mxu0 0
      %1626 = vmatprep.subr.bf16.mxu0 0
      %1627 = vmatpush2.bf16.msra.mxu0 0
      %1628 = vmatprep.mubr.bf16.mxu0 0
      %1629 = vmatmul.mubr.bf16.gmra.mxu0 %v1561
      %v1630 = vpop.f32.mrf.mxu0
      %v1631 = vadd.f32 0.0, %v1630
      %v1632 = vpop.f32.mrf.mxu0
      %v1633 = vpop.f32.mrf.mxu0
      %v1634 = vadd.f32 0.0, %v1633
      %v1635 = vpop.f32.mrf.mxu0
      %1636 = vmatprep.mubr.bf16.mxu0 0
      %1637 = vmatmul.mubr.bf16.gmra.mxu0 %v1564
      %v1638 = vpop.f32.mrf.mxu0
      %v1639 = vadd.f32 0.0, %v1638
      %v1640 = vpop.f32.mrf.mxu0
      %v1641 = vpop.f32.mrf.mxu0
      %v1642 = vadd.f32 0.0, %v1641
      %v1643 = vpop.f32.mrf.mxu0
      %1644 = vmatprep.mubr.bf16.mxu0 0
      %1645 = vmatmul.mubr.bf16.gmra.mxu0 %v1567
      %v1646 = vpop.f32.mrf.mxu0
      %v1647 = vadd.f32 0.0, %v1646
      %v1648 = vpop.f32.mrf.mxu0
      %v1649 = vpop.f32.mrf.mxu0
      %v1650 = vadd.f32 0.0, %v1649
      %v1651 = vpop.f32.mrf.mxu0
      %1652 = vmatprep.mubr.bf16.mxu0 0
      %1653 = vmatmul.mubr.bf16.gmra.mxu0 %v1570
      %v1654 = vpop.f32.mrf.mxu0
      %v1655 = vadd.f32 0.0, %v1654
      %v1656 = vpop.f32.mrf.mxu0
      %v1657 = vpop.f32.mrf.mxu0
      %v1658 = vadd.f32 0.0, %v1657
      %v1659 = vpop.f32.mrf.mxu0
      %1660 = vmatprep.mubr.bf16.mxu0 0
      %1661 = vmatmul.mubr.bf16.gmra.mxu0 %v1573
      %v1662 = vpop.f32.mrf.mxu0
      %v1663 = vadd.f32 0.0, %v1662
      %v1664 = vpop.f32.mrf.mxu0
      %v1665 = vpop.f32.mrf.mxu0
      %v1666 = vadd.f32 0.0, %v1665
      %v1667 = vpop.f32.mrf.mxu0
      %1668 = vmatprep.mubr.bf16.mxu0 0
      %1669 = vmatmul.mubr.bf16.gmra.mxu0 %v1576
      %v1670 = vpop.f32.mrf.mxu0
      %v1671 = vadd.f32 0.0, %v1670
      %v1672 = vpop.f32.mrf.mxu0
      %v1673 = vpop.f32.mrf.mxu0
      %v1674 = vadd.f32 0.0, %v1673
      %v1675 = vpop.f32.mrf.mxu0
      %1676 = vmatprep.mubr.bf16.mxu0 0
      %1677 = vmatmul.mubr.bf16.gmra.mxu0 %v1579
      %v1678 = vpop.f32.mrf.mxu0
      %v1679 = vadd.f32 0.0, %v1678
      %v1680 = vpop.f32.mrf.mxu0
      %v1681 = vpop.f32.mrf.mxu0
      %v1682 = vadd.f32 0.0, %v1681
      %v1683 = vpop.f32.mrf.mxu0
      %1684 = vmatprep.mubr.bf16.mxu0 0
      %1685 = vmatmul.mubr.bf16.gmra.mxu0 %v1582
      %v1686 = vpop.f32.mrf.mxu0
      %v1687 = vadd.f32 0.0, %v1686
      %v1688 = vpop.f32.mrf.mxu0
      %v1689 = vpop.f32.mrf.mxu0
      %v1690 = vadd.f32 0.0, %v1689
      %v1691 = vpop.f32.mrf.mxu0
      %1692 = vmatprep.mubr.bf16.mxu0 0
      %1693 = vmatmul.mubr.bf16.gmra.mxu0 %v1585
      %v1694 = vpop.f32.mrf.mxu0
      %v1695 = vadd.f32 0.0, %v1694
      %v1696 = vpop.f32.mrf.mxu0
      %v1697 = vpop.f32.mrf.mxu0
      %v1698 = vadd.f32 0.0, %v1697
      %v1699 = vpop.f32.mrf.mxu0
      %1700 = vmatprep.mubr.bf16.mxu0 0
      %1701 = vmatmul.mubr.bf16.gmra.mxu0 %v1588
      %v1702 = vpop.f32.mrf.mxu0
      %v1703 = vadd.f32 0.0, %v1702
      %v1704 = vpop.f32.mrf.mxu0
      %v1705 = vpop.f32.mrf.mxu0
      %v1706 = vadd.f32 0.0, %v1705
      %v1707 = vpop.f32.mrf.mxu0
      %1708 = vmatprep.mubr.bf16.mxu0 0
      %1709 = vmatmul.mubr.bf16.gmra.mxu0 %v1591
      %v1710 = vpop.f32.mrf.mxu0
      %v1711 = vadd.f32 0.0, %v1710
      %v1712 = vpop.f32.mrf.mxu0
      %v1713 = vpop.f32.mrf.mxu0
      %v1714 = vadd.f32 0.0, %v1713
      %v1715 = vpop.f32.mrf.mxu0
      %1716 = vmatprep.mubr.bf16.mxu0 0
      %1717 = vmatmul.mubr.bf16.gmra.mxu0 %v1594
      %v1718 = vpop.f32.mrf.mxu0
      %v1719 = vadd.f32 0.0, %v1718
      %v1720 = vpop.f32.mrf.mxu0
      %v1721 = vpop.f32.mrf.mxu0
      %v1722 = vadd.f32 0.0, %v1721
      %v1723 = vpop.f32.mrf.mxu0
      %1724 = vdwg.mxu0
      %v1725 = vadd.f32 %v1502, %v1631
      %v1726 = vadd.f32 %v1503, %v1634
      %v1727 = vadd.f32 %v1504, %v1639
      %v1728 = vadd.f32 %v1505, %v1642
      %v1729 = vadd.f32 %v1506, %v1647
      %v1730 = vadd.f32 %v1507, %v1650
      %v1731 = vadd.f32 %v1508, %v1655
      %v1732 = vadd.f32 %v1509, %v1658
      %v1733 = vadd.f32 %v1510, %v1663
      %v1734 = vadd.f32 %v1511, %v1666
      %v1735 = vadd.f32 %v1512, %v1671
      %v1736 = vadd.f32 %v1513, %v1674
      %v1737 = vadd.f32 %v1514, %v1679
      %v1738 = vadd.f32 %v1515, %v1682
      %v1739 = vadd.f32 %v1516, %v1687
      %v1740 = vadd.f32 %v1517, %v1690
      %v1741 = vadd.f32 %v1518, %v1695
      %v1742 = vadd.f32 %v1519, %v1698
      %v1743 = vadd.f32 %v1520, %v1703
      %v1744 = vadd.f32 %v1521, %v1706
      %v1745 = vadd.f32 %v1522, %v1711
      %v1746 = vadd.f32 %v1523, %v1714
      %v1747 = vadd.f32 %v1524, %v1719
      %v1748 = vadd.f32 %v1525, %v1722
      %s1749 = sadd.s32 %s195, 48
      %s1750 = sshra.s32 %s1749, 3
      %s1751 = sand.u32 %s1749, 7
      %s1752 = smul.addr %s1750, 4
      %s1753 = scalar_lea.vmem %s183, %s1752
      %v1754 = vld [vmem:[%s1753] sm:$0xf]
      %v1755 = vld [vmem:[%s1753 + $0x4] sm:$0xf]
      %v1756 = vld [vmem:[%s1753 + $0x8] sm:$0xf]
      %v1757 = vld [vmem:[%s1753 + $0xc] sm:$0xf]
      %v1758 = vld [vmem:[%s1753 + $0x10] sm:$0xf]
      %v1759 = vld [vmem:[%s1753 + $0x14] sm:$0xf]
      %v1760 = vld [vmem:[%s1753 + $0x18] sm:$0xf]
      %v1761 = vld [vmem:[%s1753 + $0x1c] sm:$0xf]
      %v1762 = vld [vmem:[%s1753 + $0x20] sm:$0xf]
      %v1763 = vld [vmem:[%s1753 + $0x24] sm:$0xf]
      %v1764 = vld [vmem:[%s1753 + $0x28] sm:$0xf]
      %v1765 = vld [vmem:[%s1753 + $0x2c] sm:$0xf]
      %v1766 = vld [vmem:[%s1753 + $0x30] sm:$0xf]
      %v1767 = vld [vmem:[%s1753 + $0x34] sm:$0xf]
      %v1768 = vld [vmem:[%s1753 + $0x38] sm:$0xf]
      %v1769 = vld [vmem:[%s1753 + $0x3c] sm:$0xf]
      %v1770 = vld [vmem:[%s1753 + $0x40] sm:$0xf]
      %v1771 = vld [vmem:[%s1753 + $0x44] sm:$0xf]
      %v1772 = vld [vmem:[%s1753 + $0x48] sm:$0xf]
      %v1773 = vld [vmem:[%s1753 + $0x4c] sm:$0xf]
      %v1774 = vld [vmem:[%s1753 + $0x50] sm:$0xf]
      %v1775 = vld [vmem:[%s1753 + $0x54] sm:$0xf]
      %v1776 = vld [vmem:[%s1753 + $0x58] sm:$0xf]
      %v1777 = vld [vmem:[%s1753 + $0x5c] sm:$0xf]
      %v1778 = vld [vmem:[%s1753 + $0x60] sm:$0xf]
      %s1779 = scalar_lea.vmem %s1, 48
      %v1780 = vld [vmem:[%s1779] sm:$0xf]
      %v1781 = vld [vmem:[%s1779 + $0x4] sm:$0xf]
      %v1806 = vunpack.c.l.b16 %v1754
      %v1807 = vunpack.c.l.b16 %v1755
      %v1808 = vunpack.c.l.b16 %v1756
      %v1809 = vunpack.c.l.b16 %v1757
      %v1810 = vunpack.c.l.b16 %v1758
      %v1811 = vunpack.c.l.b16 %v1759
      %v1812 = vunpack.c.l.b16 %v1760
      %v1813 = vunpack.c.l.b16 %v1761
      %v1814 = vunpack.c.l.b16 %v1762
      %v1815 = vunpack.c.l.b16 %v1763
      %v1816 = vunpack.c.l.b16 %v1764
      %v1817 = vunpack.c.l.b16 %v1765
      %v1818 = vunpack.c.l.b16 %v1766
      %v1819 = vunpack.c.l.b16 %v1767
      %v1820 = vunpack.c.l.b16 %v1768
      %v1821 = vunpack.c.l.b16 %v1769
      %v1822 = vunpack.c.l.b16 %v1770
      %v1823 = vunpack.c.l.b16 %v1771
      %v1824 = vunpack.c.l.b16 %v1772
      %v1825 = vunpack.c.l.b16 %v1773
      %v1826 = vunpack.c.l.b16 %v1774
      %v1827 = vunpack.c.l.b16 %v1775
      %v1828 = vunpack.c.l.b16 %v1776
      %v1829 = vunpack.c.l.b16 %v1777
      %v1830 = vpack.c.b16 %v1807, %v1806
      %v1831 = vpack.c.b16 %v1809, %v1808
      %v1832 = vpack.c.b16 %v1811, %v1810
      %v1833 = vpack.c.b16 %v1813, %v1812
      %v1834 = vpack.c.b16 %v1815, %v1814
      %v1835 = vpack.c.b16 %v1817, %v1816
      %v1836 = vpack.c.b16 %v1819, %v1818
      %v1837 = vpack.c.b16 %v1821, %v1820
      %v1838 = vpack.c.b16 %v1823, %v1822
      %v1839 = vpack.c.b16 %v1825, %v1824
      %v1840 = vpack.c.b16 %v1827, %v1826
      %v1841 = vpack.c.b16 %v1829, %v1828
      %v1844 = vunpack.c.l.b16 %v1780
      %v1845 = vunpack.c.l.b16 %v1781
      %v1846 = vpack.c.b16 %v1845, %v1844
      %v1849 = vsel %vm400, %v1830, 0
      %v1852 = vsel %vm400, %v1831, 0
      %v1855 = vsel %vm400, %v1832, 0
      %v1858 = vsel %vm400, %v1833, 0
      %v1861 = vsel %vm400, %v1834, 0
      %v1864 = vsel %vm400, %v1835, 0
      %v1867 = vsel %vm400, %v1836, 0
      %v1870 = vsel %vm400, %v1837, 0
      %v1873 = vsel %vm400, %v1838, 0
      %v1876 = vsel %vm400, %v1839, 0
      %v1879 = vsel %vm400, %v1840, 0
      %v1882 = vsel %vm400, %v1841, 0
      %1884 = vmatprep.subr.bf16.mxu0 0
      %1885 = vmatpush1.bf16.msra.mxu0 0
      %1886 = vmatprep.subr.bf16.mxu0 0
      %1887 = vmatpush1.bf16.msra.mxu0 0
      %1888 = vmatprep.subr.bf16.mxu0 0
      %1889 = vmatpush1.bf16.msra.mxu0 0
      %1890 = vmatprep.subr.bf16.mxu0 0
      %1891 = vmatpush1.bf16.msra.mxu0 0
      %1892 = vmatprep.subr.bf16.mxu0 0
      %1893 = vmatpush1.bf16.msra.mxu0 0
      %1894 = vmatprep.subr.bf16.mxu0 0
      %1895 = vmatpush1.bf16.msra.mxu0 0
      %1896 = vmatprep.subr.bf16.mxu0 0
      %1897 = vmatpush1.bf16.msra.mxu0 0
      %1898 = vmatprep.subr.bf16.mxu0 0
      %1899 = vmatpush1.bf16.msra.mxu0 %v1846
      %1900 = vmatprep.subr.bf16.mxu0 0
      %1901 = vmatpush2.bf16.msra.mxu0 0
      %1902 = vmatprep.subr.bf16.mxu0 0
      %1903 = vmatpush2.bf16.msra.mxu0 0
      %1904 = vmatprep.subr.bf16.mxu0 0
      %1905 = vmatpush2.bf16.msra.mxu0 0
      %1906 = vmatprep.subr.bf16.mxu0 0
      %1907 = vmatpush2.bf16.msra.mxu0 0
      %1908 = vmatprep.subr.bf16.mxu0 0
      %1909 = vmatpush2.bf16.msra.mxu0 0
      %1910 = vmatprep.subr.bf16.mxu0 0
      %1911 = vmatpush2.bf16.msra.mxu0 0
      %1912 = vmatprep.subr.bf16.mxu0 0
      %1913 = vmatpush2.bf16.msra.mxu0 0
      %1914 = vmatprep.subr.bf16.mxu0 0
      %1915 = vmatpush2.bf16.msra.mxu0 0
      %1916 = vmatprep.mubr.bf16.mxu0 0
      %1917 = vmatmul.mubr.bf16.gmra.mxu0 %v1849
      %v1918 = vpop.f32.mrf.mxu0
      %v1919 = vadd.f32 0.0, %v1918
      %v1920 = vpop.f32.mrf.mxu0
      %v1921 = vpop.f32.mrf.mxu0
      %v1922 = vadd.f32 0.0, %v1921
      %v1923 = vpop.f32.mrf.mxu0
      %1924 = vmatprep.mubr.bf16.mxu0 0
      %1925 = vmatmul.mubr.bf16.gmra.mxu0 %v1852
      %v1926 = vpop.f32.mrf.mxu0
      %v1927 = vadd.f32 0.0, %v1926
      %v1928 = vpop.f32.mrf.mxu0
      %v1929 = vpop.f32.mrf.mxu0
      %v1930 = vadd.f32 0.0, %v1929
      %v1931 = vpop.f32.mrf.mxu0
      %1932 = vmatprep.mubr.bf16.mxu0 0
      %1933 = vmatmul.mubr.bf16.gmra.mxu0 %v1855
      %v1934 = vpop.f32.mrf.mxu0
      %v1935 = vadd.f32 0.0, %v1934
      %v1936 = vpop.f32.mrf.mxu0
      %v1937 = vpop.f32.mrf.mxu0
      %v1938 = vadd.f32 0.0, %v1937
      %v1939 = vpop.f32.mrf.mxu0
      %1940 = vmatprep.mubr.bf16.mxu0 0
      %1941 = vmatmul.mubr.bf16.gmra.mxu0 %v1858
      %v1942 = vpop.f32.mrf.mxu0
      %v1943 = vadd.f32 0.0, %v1942
      %v1944 = vpop.f32.mrf.mxu0
      %v1945 = vpop.f32.mrf.mxu0
      %v1946 = vadd.f32 0.0, %v1945
      %v1947 = vpop.f32.mrf.mxu0
      %1948 = vmatprep.mubr.bf16.mxu0 0
      %1949 = vmatmul.mubr.bf16.gmra.mxu0 %v1861
      %v1950 = vpop.f32.mrf.mxu0
      %v1951 = vadd.f32 0.0, %v1950
      %v1952 = vpop.f32.mrf.mxu0
      %v1953 = vpop.f32.mrf.mxu0
      %v1954 = vadd.f32 0.0, %v1953
      %v1955 = vpop.f32.mrf.mxu0
      %1956 = vmatprep.mubr.bf16.mxu0 0
      %1957 = vmatmul.mubr.bf16.gmra.mxu0 %v1864
      %v1958 = vpop.f32.mrf.mxu0
      %v1959 = vadd.f32 0.0, %v1958
      %v1960 = vpop.f32.mrf.mxu0
      %v1961 = vpop.f32.mrf.mxu0
      %v1962 = vadd.f32 0.0, %v1961
      %v1963 = vpop.f32.mrf.mxu0
      %1964 = vmatprep.mubr.bf16.mxu0 0
      %1965 = vmatmul.mubr.bf16.gmra.mxu0 %v1867
      %v1966 = vpop.f32.mrf.mxu0
      %v1967 = vadd.f32 0.0, %v1966
      %v1968 = vpop.f32.mrf.mxu0
      %v1969 = vpop.f32.mrf.mxu0
      %v1970 = vadd.f32 0.0, %v1969
      %v1971 = vpop.f32.mrf.mxu0
      %1972 = vmatprep.mubr.bf16.mxu0 0
      %1973 = vmatmul.mubr.bf16.gmra.mxu0 %v1870
      %v1974 = vpop.f32.mrf.mxu0
      %v1975 = vadd.f32 0.0, %v1974
      %v1976 = vpop.f32.mrf.mxu0
      %v1977 = vpop.f32.mrf.mxu0
      %v1978 = vadd.f32 0.0, %v1977
      %v1979 = vpop.f32.mrf.mxu0
      %1980 = vmatprep.mubr.bf16.mxu0 0
      %1981 = vmatmul.mubr.bf16.gmra.mxu0 %v1873
      %v1982 = vpop.f32.mrf.mxu0
      %v1983 = vadd.f32 0.0, %v1982
      %v1984 = vpop.f32.mrf.mxu0
      %v1985 = vpop.f32.mrf.mxu0
      %v1986 = vadd.f32 0.0, %v1985
      %v1987 = vpop.f32.mrf.mxu0
      %1988 = vmatprep.mubr.bf16.mxu0 0
      %1989 = vmatmul.mubr.bf16.gmra.mxu0 %v1876
      %v1990 = vpop.f32.mrf.mxu0
      %v1991 = vadd.f32 0.0, %v1990
      %v1992 = vpop.f32.mrf.mxu0
      %v1993 = vpop.f32.mrf.mxu0
      %v1994 = vadd.f32 0.0, %v1993
      %v1995 = vpop.f32.mrf.mxu0
      %1996 = vmatprep.mubr.bf16.mxu0 0
      %1997 = vmatmul.mubr.bf16.gmra.mxu0 %v1879
      %v1998 = vpop.f32.mrf.mxu0
      %v1999 = vadd.f32 0.0, %v1998
      %v2000 = vpop.f32.mrf.mxu0
      %v2001 = vpop.f32.mrf.mxu0
      %v2002 = vadd.f32 0.0, %v2001
      %v2003 = vpop.f32.mrf.mxu0
      %2004 = vmatprep.mubr.bf16.mxu0 0
      %2005 = vmatmul.mubr.bf16.gmra.mxu0 %v1882
      %v2006 = vpop.f32.mrf.mxu0
      %v2007 = vadd.f32 0.0, %v2006
      %v2008 = vpop.f32.mrf.mxu0
      %v2009 = vpop.f32.mrf.mxu0
      %v2010 = vadd.f32 0.0, %v2009
      %v2011 = vpop.f32.mrf.mxu0
      %2012 = vdwg.mxu0
      %v2013 = vadd.f32 %v1725, %v1919
      %v2014 = vadd.f32 %v1726, %v1922
      %v2015 = vadd.f32 %v1727, %v1927
      %v2016 = vadd.f32 %v1728, %v1930
      %v2017 = vadd.f32 %v1729, %v1935
      %v2018 = vadd.f32 %v1730, %v1938
      %v2019 = vadd.f32 %v1731, %v1943
      %v2020 = vadd.f32 %v1732, %v1946
      %v2021 = vadd.f32 %v1733, %v1951
      %v2022 = vadd.f32 %v1734, %v1954
      %v2023 = vadd.f32 %v1735, %v1959
      %v2024 = vadd.f32 %v1736, %v1962
      %v2025 = vadd.f32 %v1737, %v1967
      %v2026 = vadd.f32 %v1738, %v1970
      %v2027 = vadd.f32 %v1739, %v1975
      %v2028 = vadd.f32 %v1740, %v1978
      %v2029 = vadd.f32 %v1741, %v1983
      %v2030 = vadd.f32 %v1742, %v1986
      %v2031 = vadd.f32 %v1743, %v1991
      %v2032 = vadd.f32 %v1744, %v1994
      %v2033 = vadd.f32 %v1745, %v1999
      %v2034 = vadd.f32 %v1746, %v2002
      %v2035 = vadd.f32 %v1747, %v2007
      %v2036 = vadd.f32 %v1748, %v2010
      %s2037 = scalar_lea.vmem %s1, 56
      %v2038 = vld [vmem:[%s2037] sm:$0xf]
      %v2039 = vld [vmem:[%s2037 + $0x4] sm:$0xf]
      %v2041 = vunpack.c.l.b16 %v1778
      %v2042 = vpack.c.b16 %v2041, %v2041
      %v2043 = vshrl.u32 %v1830, 16
      %v2045 = vshll.u32 %v1830, 16
      %v2047 = vrot.slane %v2045, 1
      %v2048 = vor.u32 %v2043, %v2047
      %v2049 = vshll.u32 %v1831, 16
      %v2051 = vrot.slane %v2049, 1
      %v2052 = vsel %vm293, %v2048, %v2051
      %v2053 = vshrl.u32 %v1831, 16
      %v2055 = vor.u32 %v2053, %v2051
      %v2056 = vshll.u32 %v1832, 16
      %v2058 = vrot.slane %v2056, 1
      %v2059 = vsel %vm293, %v2055, %v2058
      %v2060 = vshrl.u32 %v1832, 16
      %v2062 = vor.u32 %v2060, %v2058
      %v2063 = vshll.u32 %v1833, 16
      %v2065 = vrot.slane %v2063, 1
      %v2066 = vsel %vm293, %v2062, %v2065
      %v2067 = vshrl.u32 %v1833, 16
      %v2069 = vor.u32 %v2067, %v2065
      %v2070 = vshll.u32 %v1834, 16
      %v2072 = vrot.slane %v2070, 1
      %v2073 = vsel %vm293, %v2069, %v2072
      %v2074 = vshrl.u32 %v1834, 16
      %v2076 = vor.u32 %v2074, %v2072
      %v2077 = vshll.u32 %v1835, 16
      %v2079 = vrot.slane %v2077, 1
      %v2080 = vsel %vm293, %v2076, %v2079
      %v2081 = vshrl.u32 %v1835, 16
      %v2083 = vor.u32 %v2081, %v2079
      %v2084 = vshll.u32 %v1836, 16
      %v2086 = vrot.slane %v2084, 1
      %v2087 = vsel %vm293, %v2083, %v2086
      %v2088 = vshrl.u32 %v1836, 16
      %v2090 = vor.u32 %v2088, %v2086
      %v2091 = vshll.u32 %v1837, 16
      %v2093 = vrot.slane %v2091, 1
      %v2094 = vsel %vm293, %v2090, %v2093
      %v2095 = vshrl.u32 %v1837, 16
      %v2097 = vor.u32 %v2095, %v2093
      %v2098 = vshll.u32 %v1838, 16
      %v2100 = vrot.slane %v2098, 1
      %v2101 = vsel %vm293, %v2097, %v2100
      %v2102 = vshrl.u32 %v1838, 16
      %v2104 = vor.u32 %v2102, %v2100
      %v2105 = vshll.u32 %v1839, 16
      %v2107 = vrot.slane %v2105, 1
      %v2108 = vsel %vm293, %v2104, %v2107
      %v2109 = vshrl.u32 %v1839, 16
      %v2111 = vor.u32 %v2109, %v2107
      %v2112 = vshll.u32 %v1840, 16
      %v2114 = vrot.slane %v2112, 1
      %v2115 = vsel %vm293, %v2111, %v2114
      %v2116 = vshrl.u32 %v1840, 16
      %v2118 = vor.u32 %v2116, %v2114
      %v2119 = vshll.u32 %v1841, 16
      %v2121 = vrot.slane %v2119, 1
      %v2122 = vsel %vm293, %v2118, %v2121
      %v2123 = vshrl.u32 %v1841, 16
      %v2125 = vor.u32 %v2123, %v2121
      %v2127 = vshll.u32 %v2042, 16
      %v2129 = vrot.slane %v2127, 1
      %v2130 = vsel %vm293, %v2125, %v2129
      %v2133 = vunpack.c.l.b16 %v2038
      %v2134 = vunpack.c.l.b16 %v2039
      %v2135 = vpack.c.b16 %v2134, %v2133
      %v2138 = vsel %vm400, %v2052, 0
      %v2141 = vsel %vm400, %v2059, 0
      %v2144 = vsel %vm400, %v2066, 0
      %v2147 = vsel %vm400, %v2073, 0
      %v2150 = vsel %vm400, %v2080, 0
      %v2153 = vsel %vm400, %v2087, 0
      %v2156 = vsel %vm400, %v2094, 0
      %v2159 = vsel %vm400, %v2101, 0
      %v2162 = vsel %vm400, %v2108, 0
      %v2165 = vsel %vm400, %v2115, 0
      %v2168 = vsel %vm400, %v2122, 0
      %v2171 = vsel %vm400, %v2130, 0
      %2173 = vmatprep.subr.bf16.mxu0 0
      %2174 = vmatpush1.bf16.msra.mxu0 0
      %2175 = vmatprep.subr.bf16.mxu0 0
      %2176 = vmatpush1.bf16.msra.mxu0 0
      %2177 = vmatprep.subr.bf16.mxu0 0
      %2178 = vmatpush1.bf16.msra.mxu0 0
      %2179 = vmatprep.subr.bf16.mxu0 0
      %2180 = vmatpush1.bf16.msra.mxu0 0
      %2181 = vmatprep.subr.bf16.mxu0 0
      %2182 = vmatpush1.bf16.msra.mxu0 0
      %2183 = vmatprep.subr.bf16.mxu0 0
      %2184 = vmatpush1.bf16.msra.mxu0 0
      %2185 = vmatprep.subr.bf16.mxu0 0
      %2186 = vmatpush1.bf16.msra.mxu0 0
      %2187 = vmatprep.subr.bf16.mxu0 0
      %2188 = vmatpush1.bf16.msra.mxu0 %v2135
      %2189 = vmatprep.subr.bf16.mxu0 0
      %2190 = vmatpush2.bf16.msra.mxu0 0
      %2191 = vmatprep.subr.bf16.mxu0 0
      %2192 = vmatpush2.bf16.msra.mxu0 0
      %2193 = vmatprep.subr.bf16.mxu0 0
      %2194 = vmatpush2.bf16.msra.mxu0 0
      %2195 = vmatprep.subr.bf16.mxu0 0
      %2196 = vmatpush2.bf16.msra.mxu0 0
      %2197 = vmatprep.subr.bf16.mxu0 0
      %2198 = vmatpush2.bf16.msra.mxu0 0
      %2199 = vmatprep.subr.bf16.mxu0 0
      %2200 = vmatpush2.bf16.msra.mxu0 0
      %2201 = vmatprep.subr.bf16.mxu0 0
      %2202 = vmatpush2.bf16.msra.mxu0 0
      %2203 = vmatprep.subr.bf16.mxu0 0
      %2204 = vmatpush2.bf16.msra.mxu0 0
      %2205 = vmatprep.mubr.bf16.mxu0 0
      %2206 = vmatmul.mubr.bf16.gmra.mxu0 %v2138
      %v2207 = vpop.f32.mrf.mxu0
      %v2208 = vadd.f32 0.0, %v2207
      %v2209 = vpop.f32.mrf.mxu0
      %v2210 = vpop.f32.mrf.mxu0
      %v2211 = vadd.f32 0.0, %v2210
      %v2212 = vpop.f32.mrf.mxu0
      %2213 = vmatprep.mubr.bf16.mxu0 0
      %2214 = vmatmul.mubr.bf16.gmra.mxu0 %v2141
      %v2215 = vpop.f32.mrf.mxu0
      %v2216 = vadd.f32 0.0, %v2215
      %v2217 = vpop.f32.mrf.mxu0
      %v2218 = vpop.f32.mrf.mxu0
      %v2219 = vadd.f32 0.0, %v2218
      %v2220 = vpop.f32.mrf.mxu0
      %2221 = vmatprep.mubr.bf16.mxu0 0
      %2222 = vmatmul.mubr.bf16.gmra.mxu0 %v2144
      %v2223 = vpop.f32.mrf.mxu0
      %v2224 = vadd.f32 0.0, %v2223
      %v2225 = vpop.f32.mrf.mxu0
      %v2226 = vpop.f32.mrf.mxu0
      %v2227 = vadd.f32 0.0, %v2226
      %v2228 = vpop.f32.mrf.mxu0
      %2229 = vmatprep.mubr.bf16.mxu0 0
      %2230 = vmatmul.mubr.bf16.gmra.mxu0 %v2147
      %v2231 = vpop.f32.mrf.mxu0
      %v2232 = vadd.f32 0.0, %v2231
      %v2233 = vpop.f32.mrf.mxu0
      %v2234 = vpop.f32.mrf.mxu0
      %v2235 = vadd.f32 0.0, %v2234
      %v2236 = vpop.f32.mrf.mxu0
      %2237 = vmatprep.mubr.bf16.mxu0 0
      %2238 = vmatmul.mubr.bf16.gmra.mxu0 %v2150
      %v2239 = vpop.f32.mrf.mxu0
      %v2240 = vadd.f32 0.0, %v2239
      %v2241 = vpop.f32.mrf.mxu0
      %v2242 = vpop.f32.mrf.mxu0
      %v2243 = vadd.f32 0.0, %v2242
      %v2244 = vpop.f32.mrf.mxu0
      %2245 = vmatprep.mubr.bf16.mxu0 0
      %2246 = vmatmul.mubr.bf16.gmra.mxu0 %v2153
      %v2247 = vpop.f32.mrf.mxu0
      %v2248 = vadd.f32 0.0, %v2247
      %v2249 = vpop.f32.mrf.mxu0
      %v2250 = vpop.f32.mrf.mxu0
      %v2251 = vadd.f32 0.0, %v2250
      %v2252 = vpop.f32.mrf.mxu0
      %2253 = vmatprep.mubr.bf16.mxu0 0
      %2254 = vmatmul.mubr.bf16.gmra.mxu0 %v2156
      %v2255 = vpop.f32.mrf.mxu0
      %v2256 = vadd.f32 0.0, %v2255
      %v2257 = vpop.f32.mrf.mxu0
      %v2258 = vpop.f32.mrf.mxu0
      %v2259 = vadd.f32 0.0, %v2258
      %v2260 = vpop.f32.mrf.mxu0
      %2261 = vmatprep.mubr.bf16.mxu0 0
      %2262 = vmatmul.mubr.bf16.gmra.mxu0 %v2159
      %v2263 = vpop.f32.mrf.mxu0
      %v2264 = vadd.f32 0.0, %v2263
      %v2265 = vpop.f32.mrf.mxu0
      %v2266 = vpop.f32.mrf.mxu0
      %v2267 = vadd.f32 0.0, %v2266
      %v2268 = vpop.f32.mrf.mxu0
      %2269 = vmatprep.mubr.bf16.mxu0 0
      %2270 = vmatmul.mubr.bf16.gmra.mxu0 %v2162
      %v2271 = vpop.f32.mrf.mxu0
      %v2272 = vadd.f32 0.0, %v2271
      %v2273 = vpop.f32.mrf.mxu0
      %v2274 = vpop.f32.mrf.mxu0
      %v2275 = vadd.f32 0.0, %v2274
      %v2276 = vpop.f32.mrf.mxu0
      %2277 = vmatprep.mubr.bf16.mxu0 0
      %2278 = vmatmul.mubr.bf16.gmra.mxu0 %v2165
      %v2279 = vpop.f32.mrf.mxu0
      %v2280 = vadd.f32 0.0, %v2279
      %v2281 = vpop.f32.mrf.mxu0
      %v2282 = vpop.f32.mrf.mxu0
      %v2283 = vadd.f32 0.0, %v2282
      %v2284 = vpop.f32.mrf.mxu0
      %2285 = vmatprep.mubr.bf16.mxu0 0
      %2286 = vmatmul.mubr.bf16.gmra.mxu0 %v2168
      %v2287 = vpop.f32.mrf.mxu0
      %v2288 = vadd.f32 0.0, %v2287
      %v2289 = vpop.f32.mrf.mxu0
      %v2290 = vpop.f32.mrf.mxu0
      %v2291 = vadd.f32 0.0, %v2290
      %v2292 = vpop.f32.mrf.mxu0
      %2293 = vmatprep.mubr.bf16.mxu0 0
      %2294 = vmatmul.mubr.bf16.gmra.mxu0 %v2171
      %v2295 = vpop.f32.mrf.mxu0
      %v2296 = vadd.f32 0.0, %v2295
      %v2297 = vpop.f32.mrf.mxu0
      %v2298 = vpop.f32.mrf.mxu0
      %v2299 = vadd.f32 0.0, %v2298
      %v2300 = vpop.f32.mrf.mxu0
      %2301 = vdwg.mxu0
      %v2302 = vadd.f32 %v2013, %v2208
      %v2303 = vadd.f32 %v2014, %v2211
      %v2304 = vadd.f32 %v2015, %v2216
      %v2305 = vadd.f32 %v2016, %v2219
      %v2306 = vadd.f32 %v2017, %v2224
      %v2307 = vadd.f32 %v2018, %v2227
      %v2308 = vadd.f32 %v2019, %v2232
      %v2309 = vadd.f32 %v2020, %v2235
      %v2310 = vadd.f32 %v2021, %v2240
      %v2311 = vadd.f32 %v2022, %v2243
      %v2312 = vadd.f32 %v2023, %v2248
      %v2313 = vadd.f32 %v2024, %v2251
      %v2314 = vadd.f32 %v2025, %v2256
      %v2315 = vadd.f32 %v2026, %v2259
      %v2316 = vadd.f32 %v2027, %v2264
      %v2317 = vadd.f32 %v2028, %v2267
      %v2318 = vadd.f32 %v2029, %v2272
      %v2319 = vadd.f32 %v2030, %v2275
      %v2320 = vadd.f32 %v2031, %v2280
      %v2321 = vadd.f32 %v2032, %v2283
      %v2322 = vadd.f32 %v2033, %v2288
      %v2323 = vadd.f32 %v2034, %v2291
      %v2324 = vadd.f32 %v2035, %v2296
      %v2325 = vadd.f32 %v2036, %v2299
      %s2326 = scalar_lea.vmem %s1, 64
      %v2327 = vld [vmem:[%s2326] sm:$0xf]
      %v2328 = vld [vmem:[%s2326 + $0x4] sm:$0xf]
      %v2329 = vrot.slane %v1830, 1
      %v2330 = vrot.slane %v1831, 1
      %v2331 = vsel %vm728, %v2329, %v2330
      %v2332 = vrot.slane %v1832, 1
      %v2333 = vsel %vm728, %v2330, %v2332
      %v2334 = vrot.slane %v1833, 1
      %v2335 = vsel %vm728, %v2332, %v2334
      %v2336 = vrot.slane %v1834, 1
      %v2337 = vsel %vm728, %v2334, %v2336
      %v2338 = vrot.slane %v1835, 1
      %v2339 = vsel %vm728, %v2336, %v2338
      %v2340 = vrot.slane %v1836, 1
      %v2341 = vsel %vm728, %v2338, %v2340
      %v2342 = vrot.slane %v1837, 1
      %v2343 = vsel %vm728, %v2340, %v2342
      %v2344 = vrot.slane %v1838, 1
      %v2345 = vsel %vm728, %v2342, %v2344
      %v2346 = vrot.slane %v1839, 1
      %v2347 = vsel %vm728, %v2344, %v2346
      %v2348 = vrot.slane %v1840, 1
      %v2349 = vsel %vm728, %v2346, %v2348
      %v2350 = vrot.slane %v1841, 1
      %v2351 = vsel %vm728, %v2348, %v2350
      %v2352 = vrot.slane %v2042, 1
      %v2353 = vsel %vm728, %v2350, %v2352
      %v2356 = vunpack.c.l.b16 %v2327
      %v2357 = vunpack.c.l.b16 %v2328
      %v2358 = vpack.c.b16 %v2357, %v2356
      %v2361 = vsel %vm400, %v2331, 0
      %v2364 = vsel %vm400, %v2333, 0
      %v2367 = vsel %vm400, %v2335, 0
      %v2370 = vsel %vm400, %v2337, 0
      %v2373 = vsel %vm400, %v2339, 0
      %v2376 = vsel %vm400, %v2341, 0
      %v2379 = vsel %vm400, %v2343, 0
      %v2382 = vsel %vm400, %v2345, 0
      %v2385 = vsel %vm400, %v2347, 0
      %v2388 = vsel %vm400, %v2349, 0
      %v2391 = vsel %vm400, %v2351, 0
      %v2394 = vsel %vm400, %v2353, 0
      %2396 = vmatprep.subr.bf16.mxu0 0
      %2397 = vmatpush1.bf16.msra.mxu0 0
      %2398 = vmatprep.subr.bf16.mxu0 0
      %2399 = vmatpush1.bf16.msra.mxu0 0
      %2400 = vmatprep.subr.bf16.mxu0 0
      %2401 = vmatpush1.bf16.msra.mxu0 0
      %2402 = vmatprep.subr.bf16.mxu0 0
      %2403 = vmatpush1.bf16.msra.mxu0 0
      %2404 = vmatprep.subr.bf16.mxu0 0
      %2405 = vmatpush1.bf16.msra.mxu0 0
      %2406 = vmatprep.subr.bf16.mxu0 0
      %2407 = vmatpush1.bf16.msra.mxu0 0
      %2408 = vmatprep.subr.bf16.mxu0 0
      %2409 = vmatpush1.bf16.msra.mxu0 0
      %2410 = vmatprep.subr.bf16.mxu0 0
      %2411 = vmatpush1.bf16.msra.mxu0 %v2358
      %2412 = vmatprep.subr.bf16.mxu0 0
      %2413 = vmatpush2.bf16.msra.mxu0 0
      %2414 = vmatprep.subr.bf16.mxu0 0
      %2415 = vmatpush2.bf16.msra.mxu0 0
      %2416 = vmatprep.subr.bf16.mxu0 0
      %2417 = vmatpush2.bf16.msra.mxu0 0
      %2418 = vmatprep.subr.bf16.mxu0 0
      %2419 = vmatpush2.bf16.msra.mxu0 0
      %2420 = vmatprep.subr.bf16.mxu0 0
      %2421 = vmatpush2.bf16.msra.mxu0 0
      %2422 = vmatprep.subr.bf16.mxu0 0
      %2423 = vmatpush2.bf16.msra.mxu0 0
      %2424 = vmatprep.subr.bf16.mxu0 0
      %2425 = vmatpush2.bf16.msra.mxu0 0
      %2426 = vmatprep.subr.bf16.mxu0 0
      %2427 = vmatpush2.bf16.msra.mxu0 0
      %2428 = vmatprep.mubr.bf16.mxu0 0
      %2429 = vmatmul.mubr.bf16.gmra.mxu0 %v2361
      %v2430 = vpop.f32.mrf.mxu0
      %v2431 = vadd.f32 0.0, %v2430
      %v2432 = vpop.f32.mrf.mxu0
      %v2433 = vpop.f32.mrf.mxu0
      %v2434 = vadd.f32 0.0, %v2433
      %v2435 = vpop.f32.mrf.mxu0
      %2436 = vmatprep.mubr.bf16.mxu0 0
      %2437 = vmatmul.mubr.bf16.gmra.mxu0 %v2364
      %v2438 = vpop.f32.mrf.mxu0
      %v2439 = vadd.f32 0.0, %v2438
      %v2440 = vpop.f32.mrf.mxu0
      %v2441 = vpop.f32.mrf.mxu0
      %v2442 = vadd.f32 0.0, %v2441
      %v2443 = vpop.f32.mrf.mxu0
      %2444 = vmatprep.mubr.bf16.mxu0 0
      %2445 = vmatmul.mubr.bf16.gmra.mxu0 %v2367
      %v2446 = vpop.f32.mrf.mxu0
      %v2447 = vadd.f32 0.0, %v2446
      %v2448 = vpop.f32.mrf.mxu0
      %v2449 = vpop.f32.mrf.mxu0
      %v2450 = vadd.f32 0.0, %v2449
      %v2451 = vpop.f32.mrf.mxu0
      %2452 = vmatprep.mubr.bf16.mxu0 0
      %2453 = vmatmul.mubr.bf16.gmra.mxu0 %v2370
      %v2454 = vpop.f32.mrf.mxu0
      %v2455 = vadd.f32 0.0, %v2454
      %v2456 = vpop.f32.mrf.mxu0
      %v2457 = vpop.f32.mrf.mxu0
      %v2458 = vadd.f32 0.0, %v2457
      %v2459 = vpop.f32.mrf.mxu0
      %2460 = vmatprep.mubr.bf16.mxu0 0
      %2461 = vmatmul.mubr.bf16.gmra.mxu0 %v2373
      %v2462 = vpop.f32.mrf.mxu0
      %v2463 = vadd.f32 0.0, %v2462
      %v2464 = vpop.f32.mrf.mxu0
      %v2465 = vpop.f32.mrf.mxu0
      %v2466 = vadd.f32 0.0, %v2465
      %v2467 = vpop.f32.mrf.mxu0
      %2468 = vmatprep.mubr.bf16.mxu0 0
      %2469 = vmatmul.mubr.bf16.gmra.mxu0 %v2376
      %v2470 = vpop.f32.mrf.mxu0
      %v2471 = vadd.f32 0.0, %v2470
      %v2472 = vpop.f32.mrf.mxu0
      %v2473 = vpop.f32.mrf.mxu0
      %v2474 = vadd.f32 0.0, %v2473
      %v2475 = vpop.f32.mrf.mxu0
      %2476 = vmatprep.mubr.bf16.mxu0 0
      %2477 = vmatmul.mubr.bf16.gmra.mxu0 %v2379
      %v2478 = vpop.f32.mrf.mxu0
      %v2479 = vadd.f32 0.0, %v2478
      %v2480 = vpop.f32.mrf.mxu0
      %v2481 = vpop.f32.mrf.mxu0
      %v2482 = vadd.f32 0.0, %v2481
      %v2483 = vpop.f32.mrf.mxu0
      %2484 = vmatprep.mubr.bf16.mxu0 0
      %2485 = vmatmul.mubr.bf16.gmra.mxu0 %v2382
      %v2486 = vpop.f32.mrf.mxu0
      %v2487 = vadd.f32 0.0, %v2486
      %v2488 = vpop.f32.mrf.mxu0
      %v2489 = vpop.f32.mrf.mxu0
      %v2490 = vadd.f32 0.0, %v2489
      %v2491 = vpop.f32.mrf.mxu0
      %2492 = vmatprep.mubr.bf16.mxu0 0
      %2493 = vmatmul.mubr.bf16.gmra.mxu0 %v2385
      %v2494 = vpop.f32.mrf.mxu0
      %v2495 = vadd.f32 0.0, %v2494
      %v2496 = vpop.f32.mrf.mxu0
      %v2497 = vpop.f32.mrf.mxu0
      %v2498 = vadd.f32 0.0, %v2497
      %v2499 = vpop.f32.mrf.mxu0
      %2500 = vmatprep.mubr.bf16.mxu0 0
      %2501 = vmatmul.mubr.bf16.gmra.mxu0 %v2388
      %v2502 = vpop.f32.mrf.mxu0
      %v2503 = vadd.f32 0.0, %v2502
      %v2504 = vpop.f32.mrf.mxu0
      %v2505 = vpop.f32.mrf.mxu0
      %v2506 = vadd.f32 0.0, %v2505
      %v2507 = vpop.f32.mrf.mxu0
      %2508 = vmatprep.mubr.bf16.mxu0 0
      %2509 = vmatmul.mubr.bf16.gmra.mxu0 %v2391
      %v2510 = vpop.f32.mrf.mxu0
      %v2511 = vadd.f32 0.0, %v2510
      %v2512 = vpop.f32.mrf.mxu0
      %v2513 = vpop.f32.mrf.mxu0
      %v2514 = vadd.f32 0.0, %v2513
      %v2515 = vpop.f32.mrf.mxu0
      %2516 = vmatprep.mubr.bf16.mxu0 0
      %2517 = vmatmul.mubr.bf16.gmra.mxu0 %v2394
      %v2518 = vpop.f32.mrf.mxu0
      %v2519 = vadd.f32 0.0, %v2518
      %v2520 = vpop.f32.mrf.mxu0
      %v2521 = vpop.f32.mrf.mxu0
      %v2522 = vadd.f32 0.0, %v2521
      %v2523 = vpop.f32.mrf.mxu0
      %2524 = vdwg.mxu0
      %v2525 = vadd.f32 %v2302, %v2431
      %v2526 = vadd.f32 %v2303, %v2434
      %v2527 = vadd.f32 %v2304, %v2439
      %v2528 = vadd.f32 %v2305, %v2442
      %v2529 = vadd.f32 %v2306, %v2447
      %v2530 = vadd.f32 %v2307, %v2450
      %v2531 = vadd.f32 %v2308, %v2455
      %v2532 = vadd.f32 %v2309, %v2458
      %v2533 = vadd.f32 %v2310, %v2463
      %v2534 = vadd.f32 %v2311, %v2466
      %v2535 = vadd.f32 %v2312, %v2471
      %v2536 = vadd.f32 %v2313, %v2474
      %v2537 = vadd.f32 %v2314, %v2479
      %v2538 = vadd.f32 %v2315, %v2482
      %v2539 = vadd.f32 %v2316, %v2487
      %v2540 = vadd.f32 %v2317, %v2490
      %v2541 = vadd.f32 %v2318, %v2495
      %v2542 = vadd.f32 %v2319, %v2498
      %v2543 = vadd.f32 %v2320, %v2503
      %v2544 = vadd.f32 %v2321, %v2506
      %v2545 = vadd.f32 %v2322, %v2511
      %v2546 = vadd.f32 %v2323, %v2514
      %v2547 = vadd.f32 %v2324, %v2519
      %v2548 = vadd.f32 %v2325, %v2522
      %v2549 = vld [vmem:[%s2] sm:$0x1]
      %v2551 = vlaneseq
      %v2552 = vshrl.u32 %v2551, 7
      %v2553 = vsub.s32 0, %v2552
      %v2554 = vrot.slane %v2549, %v2553
      %v2556 = vadd.f32 %v2525, %v2554
      %v2557 = vadd.f32 %v2526, %v2554
      %v2558 = vadd.f32 %v2527, %v2554
      %v2559 = vadd.f32 %v2528, %v2554
      %v2560 = vadd.f32 %v2529, %v2554
      %v2561 = vadd.f32 %v2530, %v2554
      %v2562 = vadd.f32 %v2531, %v2554
      %v2563 = vadd.f32 %v2532, %v2554
      %v2564 = vadd.f32 %v2533, %v2554
      %v2565 = vadd.f32 %v2534, %v2554
      %v2566 = vadd.f32 %v2535, %v2554
      %v2567 = vadd.f32 %v2536, %v2554
      %v2568 = vadd.f32 %v2537, %v2554
      %v2569 = vadd.f32 %v2538, %v2554
      %v2570 = vadd.f32 %v2539, %v2554
      %v2571 = vadd.f32 %v2540, %v2554
      %v2572 = vadd.f32 %v2541, %v2554
      %v2573 = vadd.f32 %v2542, %v2554
      %v2574 = vadd.f32 %v2543, %v2554
      %v2575 = vadd.f32 %v2544, %v2554
      %v2576 = vadd.f32 %v2545, %v2554
      %v2577 = vadd.f32 %v2546, %v2554
      %v2578 = vadd.f32 %v2547, %v2554
      %v2579 = vadd.f32 %v2548, %v2554
      %v2580 = vmax.f32 %v2556, 0.0
      %v2581 = vmax.f32 %v2557, 0.0
      %v2582 = vmax.f32 %v2558, 0.0
      %v2583 = vmax.f32 %v2559, 0.0
      %v2584 = vmax.f32 %v2560, 0.0
      %v2585 = vmax.f32 %v2561, 0.0
      %v2586 = vmax.f32 %v2562, 0.0
      %v2587 = vmax.f32 %v2563, 0.0
      %v2588 = vmax.f32 %v2564, 0.0
      %v2589 = vmax.f32 %v2565, 0.0
      %v2590 = vmax.f32 %v2566, 0.0
      %v2591 = vmax.f32 %v2567, 0.0
      %v2592 = vmax.f32 %v2568, 0.0
      %v2593 = vmax.f32 %v2569, 0.0
      %v2594 = vmax.f32 %v2570, 0.0
      %v2595 = vmax.f32 %v2571, 0.0
      %v2596 = vmax.f32 %v2572, 0.0
      %v2597 = vmax.f32 %v2573, 0.0
      %v2598 = vmax.f32 %v2574, 0.0
      %v2599 = vmax.f32 %v2575, 0.0
      %v2600 = vmax.f32 %v2576, 0.0
      %v2601 = vmax.f32 %v2577, 0.0
      %v2602 = vmax.f32 %v2578, 0.0
      %v2603 = vmax.f32 %v2579, 0.0
      %v2604 = vpack.c.bf16 %v2581, %v2580
      %v2605 = vpack.c.bf16 %v2583, %v2582
      %v2606 = vpack.c.bf16 %v2585, %v2584
      %v2607 = vpack.c.bf16 %v2587, %v2586
      %v2608 = vpack.c.bf16 %v2589, %v2588
      %v2609 = vpack.c.bf16 %v2591, %v2590
      %v2610 = vpack.c.bf16 %v2593, %v2592
      %v2611 = vpack.c.bf16 %v2595, %v2594
      %v2612 = vpack.c.bf16 %v2597, %v2596
      %v2613 = vpack.c.bf16 %v2599, %v2598
      %v2614 = vpack.c.bf16 %v2601, %v2600
      %v2615 = vpack.c.bf16 %v2603, %v2602
      %v2628 = vunpack.c.l.b16 %v2604
      %v2629 = vunpack.c.h.b16 %v2604
      %v2630 = vunpack.c.l.b16 %v2605
      %v2631 = vunpack.c.h.b16 %v2605
      %v2632 = vunpack.c.l.b16 %v2606
      %v2633 = vunpack.c.h.b16 %v2606
      %v2634 = vunpack.c.l.b16 %v2607
      %v2635 = vunpack.c.h.b16 %v2607
      %v2636 = vunpack.c.l.b16 %v2608
      %v2637 = vunpack.c.h.b16 %v2608
      %v2638 = vunpack.c.l.b16 %v2609
      %v2639 = vunpack.c.h.b16 %v2609
      %v2640 = vunpack.c.l.b16 %v2610
      %v2641 = vunpack.c.h.b16 %v2610
      %v2642 = vunpack.c.l.b16 %v2611
      %v2643 = vunpack.c.h.b16 %v2611
      %v2644 = vunpack.c.l.b16 %v2612
      %v2645 = vunpack.c.h.b16 %v2612
      %v2646 = vunpack.c.l.b16 %v2613
      %v2647 = vunpack.c.h.b16 %v2613
      %v2648 = vunpack.c.l.b16 %v2614
      %v2649 = vunpack.c.h.b16 %v2614
      %v2650 = vunpack.c.l.b16 %v2615
      %v2651 = vunpack.c.h.b16 %v2615
      %v2652 = vpack.c.b16 %v2628, %v2628
      %v2653 = vpack.c.b16 %v2629, %v2629
      %v2654 = vpack.c.b16 %v2630, %v2630
      %v2655 = vpack.c.b16 %v2631, %v2631
      %v2656 = vpack.c.b16 %v2632, %v2632
      %v2657 = vpack.c.b16 %v2633, %v2633
      %v2658 = vpack.c.b16 %v2634, %v2634
      %v2659 = vpack.c.b16 %v2635, %v2635
      %v2660 = vpack.c.b16 %v2636, %v2636
      %v2661 = vpack.c.b16 %v2637, %v2637
      %v2662 = vpack.c.b16 %v2638, %v2638
      %v2663 = vpack.c.b16 %v2639, %v2639
      %v2664 = vpack.c.b16 %v2640, %v2640
      %v2665 = vpack.c.b16 %v2641, %v2641
      %v2666 = vpack.c.b16 %v2642, %v2642
      %v2667 = vpack.c.b16 %v2643, %v2643
      %v2668 = vpack.c.b16 %v2644, %v2644
      %v2669 = vpack.c.b16 %v2645, %v2645
      %v2670 = vpack.c.b16 %v2646, %v2646
      %v2671 = vpack.c.b16 %v2647, %v2647
      %v2672 = vpack.c.b16 %v2648, %v2648
      %v2673 = vpack.c.b16 %v2649, %v2649
      %v2674 = vpack.c.b16 %v2650, %v2650
      %v2675 = vpack.c.b16 %v2651, %v2651
      %2700 = vst [vmem:[%s192] sm:$0xf] %v2652
      %2701 = vst [vmem:[%s192 + $0x4] sm:$0xf] %v2653
      %2702 = vst [vmem:[%s192 + $0x8] sm:$0xf] %v2654
      %2703 = vst [vmem:[%s192 + $0xc] sm:$0xf] %v2655
      %2704 = vst [vmem:[%s192 + $0x10] sm:$0xf] %v2656
      %2705 = vst [vmem:[%s192 + $0x14] sm:$0xf] %v2657
      %2706 = vst [vmem:[%s192 + $0x18] sm:$0xf] %v2658
      %2707 = vst [vmem:[%s192 + $0x1c] sm:$0xf] %v2659
      %2708 = vst [vmem:[%s192 + $0x20] sm:$0xf] %v2660
      %2709 = vst [vmem:[%s192 + $0x24] sm:$0xf] %v2661
      %2710 = vst [vmem:[%s192 + $0x28] sm:$0xf] %v2662
      %2711 = vst [vmem:[%s192 + $0x2c] sm:$0xf] %v2663
      %2712 = vst [vmem:[%s192 + $0x30] sm:$0xf] %v2664
      %2713 = vst [vmem:[%s192 + $0x34] sm:$0xf] %v2665
      %2714 = vst [vmem:[%s192 + $0x38] sm:$0xf] %v2666
      %2715 = vst [vmem:[%s192 + $0x3c] sm:$0xf] %v2667
      %2716 = vst [vmem:[%s192 + $0x40] sm:$0xf] %v2668
      %2717 = vst [vmem:[%s192 + $0x44] sm:$0xf] %v2669
      %2718 = vst [vmem:[%s192 + $0x48] sm:$0xf] %v2670
      %2719 = vst [vmem:[%s192 + $0x4c] sm:$0xf] %v2671
      %2720 = vst [vmem:[%s192 + $0x50] sm:$0xf] %v2672
      %2721 = vst [vmem:[%s192 + $0x54] sm:$0xf] %v2673
      %2722 = vst [vmem:[%s192 + $0x58] sm:$0xf] %v2674
      %2723 = vst [vmem:[%s192 + $0x5c] sm:$0xf] %v2675
      %s2724 = smul.u32 24, %s19
      %p2725 = scmp.lt.s32.totalorder %s18, 1
      %s2726 = scalar_select %p2725, %s18, 1
      %p2727 = scmp.lt.s32.totalorder %s2724, 47
      %s2728 = scalar_select %p2727, %s2724, 47
      %s2729 = smul.addr %s2726, 48
      %s2730 = sadd.s32 %s2728, %s2729
      %s2731 = smul.addr %s2730, 4
      %s2732 = scalar_lea.vmem %s3, %s2731
      // Predicated region
      $region33: #{basic_conv2d_nchw.1} parent=31 // pred_check
        %p2733 = pneg %p114
      $region34: #{basic_conv2d_nchw.1} parent=31 // pred_check_branch
        %2735 = sbr.rel (%p2733) target = $region36
      $region35: #{basic_conv2d_nchw.1} parent=31 // pred_region
        %s2736 = smul.u32 24, %s19
      $region36: #{basic_conv2d_nchw.1} parent=31 // pred_fallthru
        _
    $region32: #{basic_conv2d_nchw.1} parent=5 // pred_fallthru
      _
    %p2737 = scmp.le.s32.totalorder 2, %s9
    // Predicated region
    $region37: #{basic_conv2d_nchw.1} parent=5 // pred_check
      %p2738 = pneg %p2737
    $region38: #{basic_conv2d_nchw.1} parent=5 // pred_check_branch
      %2740 = sbr.rel (%p2738) target = $region40
    $region39: #{basic_conv2d_nchw.1} parent=5 // pred_region
      %s2741 = ssub.s32 %s9, 2
      // Predicated region
      $region41: #{basic_conv2d_nchw.1} parent=39 // pred_check
        %p2742 = pneg %p120
      $region42: #{basic_conv2d_nchw.1} parent=39 // pred_check_branch
        %2744 = sbr.rel (%p2742) target = $region44
      $region43: #{basic_conv2d_nchw.1} parent=39 // pred_region
        %s2745 = smul.u32 24, %s21
        %p2746 = scmp.lt.s32.totalorder %s20, 1
        %s2747 = scalar_select %p2746, %s20, 1
        %p2748 = scmp.lt.s32.totalorder %s2745, 47
        %s2749 = scalar_select %p2748, %s2745, 47
        %s2750 = smul.addr %s2747, 48
        %s2751 = sadd.s32 %s2749, %s2750
        %s2752 = smul.addr %s2751, 4
        %s2753 = scalar_lea.vmem %s3, %s2752
      $region44: #{basic_conv2d_nchw.1} parent=39 // pred_fallthru
        _
    $region40: #{basic_conv2d_nchw.1} parent=5 // pred_fallthru
      _
  $region6: #{basic_conv2d_nchw.1} parent=0 // loop_footer
    %s13 = sadd.s32 1, %s9
  $region7: #{basic_conv2d_nchw.1} parent=0 // loop_footer_branch
    %8 = sbr.rel target = $region3
  $region8: #{basic_conv2d_nchw.1} parent=0 // loop_exit
    _

</llo_original>
